<compile_context>
chip_gen: v7x
topology: tpu7x:2x2x1
jax: 0.10.0
libtpu: 0.0.40
codegen_flags: <defaults>
</compile_context>

<pallas_src>
import functools

import jax
import jax.numpy as jnp
from jax.experimental import pallas as pl
from jax.experimental.pallas import tpu as pltpu


def _vmem_capacity_bytes():
    """Physical VMEM per TensorCore; conservative 64 MiB (v7x) fallback."""
    try:
        return int(pltpu.get_tpu_info().vmem_capacity_bytes)
    except Exception:
        return 64 << 20


def pick_tiles(n_tokens, dim, hidden_dim, *, row_tile=None, hidden_tile=None):
    """Device-aware (tn, th) selection.

    * 128-MiB-VMEM chips (v5e/v6e): tn=th=1024 so each re-streamed weight
      byte feeds >=1024 MXU FLOPs (above the ~670 FLOP/B v6e HBM ridge).
    * 64-MiB chips (v7x): tn=th=512 (fits with headroom, still above the
      ~310 FLOP/B ridge).
    * tn is a multiple of 16 (bf16 sublane packing) and divides N; if the
      parallel grid would have an odd step count, tn is halved so v7x's two
      TensorCores stay balanced.
    * th is a multiple of 128 dividing H, or H itself.
    """
    big_vmem = _vmem_capacity_bytes() >= (100 << 20)
    if row_tile is None:
        row_tile = 1024 if big_vmem else 512
    if hidden_tile is None:
        hidden_tile = 1024 if big_vmem else 512

    assert n_tokens % 16 == 0, "token count must be a multiple of 16"
    tn = min(row_tile, n_tokens)
    if n_tokens % tn != 0 or tn % 16 != 0:
        tn = max(t for t in range(16, min(row_tile, n_tokens) + 1, 16)
                 if n_tokens % t == 0)
    # Even parallel grid so v7x's 2 TensorCores both get work.
    if (n_tokens // tn) % 2 == 1 and tn % 32 == 0 and tn >= 256:
        tn //= 2

    th = min(hidden_tile, hidden_dim)
    if hidden_dim % th != 0 or th % 128 != 0:
        candidates = [t for t in range(128, min(hidden_tile, hidden_dim) + 1, 128)
                      if hidden_dim % t == 0]
        th = max(candidates) if candidates else hidden_dim
    return tn, th


def prepare_params(w1_t, w3_t, w2_t, *, hidden_tile, compute_dtype=jnp.bfloat16):
    """One-time prep (call OUTSIDE the forward path):

    * cast all weights to the MXU compute dtype once (no per-call converts),
    * fuse w1/w3 into one streamed operand, interleaved per hidden tile:
        w13[:, h*2*th : h*2*th+th]     = w1_t[:, h*th:(h+1)*th]
        w13[:, h*2*th+th : (h+1)*2*th] = w3_t[:, h*th:(h+1)*th]
      so the kernel DMAs one (D, 2*th) tile and issues a single MXU matmul
      for both the gate and up projections.
    """
    D, H = w1_t.shape
    th = min(hidden_tile, H)
    assert H % th == 0
    w1b = w1_t.astype(compute_dtype).reshape(D, H // th, th)
    w3b = w3_t.astype(compute_dtype).reshape(D, H // th, th)
    w13 = jnp.concatenate([w1b, w3b], axis=2).reshape(D, 2 * H)
    return w13, w2_t.astype(compute_dtype)


def _mlp_kernel(x_ref, w13_ref, w2_ref, o_ref, acc_ref, *, th):
    # x_ref:   (TN, D)     token-row tile (resident across the H grid axis)
    # w13_ref: (D, 2*TH)   fused streamed tile: [w1 tile | w3 tile]
    # w2_ref:  (TH, D)     streamed hidden tile of w2^T
    # o_ref:   (TN, D)     output tile (written once, at the last H step)
    # acc_ref: (TN, D)     f32 accumulator scratch
    h_idx = pl.program_id(1)

    @pl.when(h_idx == 0)
    def _():
        acc_ref[...] = jnp.zeros_like(acc_ref)

    # Single MXU matmul covering both the gate (w1) and up (w3) projections,
    # bf16 operands with f32 accumulation.
    h13 = jnp.dot(x_ref[...], w13_ref[...], preferred_element_type=jnp.float32)
    h1 = h13[:, :th]          # th is a multiple of 128 -> layout-free slice
    h3 = h13[:, th:]

    # SiLU(h1) * h3 — gated activation kept in f32 on the VPU/EUP
    # (v5e has no bf16 VPU/EUP path).
    gated = (h1 * jax.nn.sigmoid(h1)) * h3

    # Partial contraction over this hidden tile, accumulated in f32.
    acc_ref[...] += jnp.dot(gated.astype(w2_ref.dtype), w2_ref[...],
                            preferred_element_type=jnp.float32)

    @pl.when(h_idx == pl.num_programs(1) - 1)
    def _():
        # TODO(synk): training-mode dropout (stateful PRNG mask) omitted;
        # this is the eval/inference path where nn.Dropout is the identity.
        o_ref[...] = acc_ref[...].astype(o_ref.dtype)


@functools.partial(jax.jit,
                   static_argnames=("row_tile", "hidden_tile", "out_dtype"))
def mlp_forward(x, w13, w2c, *, row_tile, hidden_tile, out_dtype=None):
    """x: [B, S, D]; w13: [D, 2H] (from prepare_params with the SAME
    hidden_tile); w2c: [H, D].  Returns [B, S, D] in out_dtype (default
    x.dtype; pass jnp.bfloat16 when the surrounding model is bf16)."""
    B, S, D = x.shape
    H = w2c.shape[0]
    assert w13.shape == (D, 2 * H)
    N = B * S

    tn = min(row_tile, N)
    th = min(hidden_tile, H)
    assert N % tn == 0, "token count must be divisible by the row tile"
    assert H % th == 0, "hidden_dim must be divisible by the hidden tile"
    assert tn == N or tn % 16 == 0        # bf16 sublane packing
    assert th == H or th % 128 == 0       # lane granularity

    compute_dtype = w13.dtype
    out_dtype = out_dtype or x.dtype
    x2d = x.reshape(N, D).astype(compute_dtype)

    itemsize = jnp.dtype(compute_dtype).itemsize
    out_itemsize = jnp.dtype(out_dtype).itemsize

    # VMEM budget: double-buffered x / fused-w13 / w2 / output tiles + f32 acc.
    tile_bytes = (
        2 * tn * D * itemsize           # x tile
        + 2 * D * (2 * th) * itemsize   # fused w1|w3 tile
        + 2 * th * D * itemsize         # w2 tile
        + 2 * tn * D * out_itemsize     # output tile
        + tn * D * 4                    # f32 accumulator scratch
    )
    vmem_cap = _vmem_capacity_bytes()
    vmem_limit = max(tile_bytes + (4 << 20), 32 << 20)
    vmem_limit = min(vmem_limit, vmem_cap - (4 << 20))   # never exceed device VMEM

    n_row_tiles = N // tn
    cost = pl.CostEstimate(
        flops=int(6 * N * D * H),            # 3 matmuls of 2*N*D*H each
        transcendentals=int(N * H),          # sigmoid
        # Weights are re-streamed HBM->VMEM once per row tile.
        bytes_accessed=int(N * D * itemsize
                           + n_row_tiles * 3 * D * H * itemsize
                           + N * D * out_itemsize),
    )

    out2d = pl.pallas_call(
        functools.partial(_mlp_kernel, th=th),
        out_shape=jax.ShapeDtypeStruct((N, D), out_dtype),
        grid_spec=pltpu.PrefetchScalarGridSpec(
            num_scalar_prefetch=0,
            grid=(N // tn, H // th),                       # reduction axis last
            in_specs=[
                pl.BlockSpec((tn, D), lambda i, h: (i, 0)),      # x rows
                pl.BlockSpec((D, 2 * th), lambda i, h: (0, h)),  # fused w1|w3
                pl.BlockSpec((th, D), lambda i, h: (h, 0)),      # w2^T tile
            ],
            out_specs=pl.BlockSpec((tn, D), lambda i, h: (i, 0)),
            scratch_shapes=[pltpu.VMEM((tn, D), jnp.float32)],
        ),
        compiler_params=pltpu.CompilerParams(
            dimension_semantics=("parallel", "arbitrary"),
            vmem_limit_bytes=int(vmem_limit),
        ),
        cost_estimate=cost,
    )(x2d, w13, w2c)

    return out2d.reshape(B, S, D)


def init_params(key, dim, hidden_dim, dtype=jnp.float32):
    """Deterministic init matching nn.Linear default: U(-1/sqrt(fan_in), +)."""
    k1, k2, k3 = jax.random.split(key, 3)
    b1 = 1.0 / (dim ** 0.5)         # fan_in = dim for w1, w3
    b2 = 1.0 / (hidden_dim ** 0.5)  # fan_in = hidden_dim for w2
    # PyTorch stores Linear weight as [out, in]; we keep the transposed
    # [in, out] layout so the kernel does x @ W directly.
    w1_t = jax.random.uniform(k1, (dim, hidden_dim), dtype, -b1, b1)
    w3_t = jax.random.uniform(k3, (dim, hidden_dim), dtype, -b1, b1)
    w2_t = jax.random.uniform(k2, (hidden_dim, dim), dtype, -b2, b2)
    return w1_t, w3_t, w2_t


if __name__ == "__main__":
    # Small but MXU/lane-friendly shapes: tokens [batch, seq, dim].
    batch, seq, dim, hidden_dim = 2, 128, 256, 512
    dropout_p = 0.0  # eval path: nn.Dropout is the identity

    key = jax.random.PRNGKey(0)
    kx, kp = jax.random.split(key)
    x = jax.random.normal(kx, (batch, seq, dim), jnp.float32)
    w1_t, w3_t, w2_t = init_params(kp, dim, hidden_dim)

    # One-time, outside the forward path: device-aware tile selection plus
    # weight cast/fusion.  hidden_tile=256 so the demo also exercises the
    # H-axis accumulation path.
    tn, th = pick_tiles(batch * seq, dim, hidden_dim, hidden_tile=256)
    w13, w2c = prepare_params(w1_t, w3_t, w2_t, hidden_tile=th)

    out = mlp_forward(x, w13, w2c, row_tile=tn, hidden_tile=th)
    jax.block_until_ready(out)

    # Reference with matching bf16-operand / f32-accumulate numerics.
    xb = x.reshape(-1, dim).astype(jnp.bfloat16)
    h1 = jnp.dot(xb, w1_t.astype(jnp.bfloat16), preferred_element_type=jnp.float32)
    h3 = jnp.dot(xb, w3_t.astype(jnp.bfloat16), preferred_element_type=jnp.float32)
    gated = (h1 * jax.nn.sigmoid(h1)) * h3
    ref = jnp.dot(gated.astype(jnp.bfloat16), w2_t.astype(jnp.bfloat16),
                  preferred_element_type=jnp.float32)
    ref = ref.reshape(batch, seq, dim).astype(x.dtype)

    assert out.shape == (batch, seq, dim)
    assert jnp.allclose(out, ref, atol=2e-2, rtol=2e-2), (
        float(jnp.max(jnp.abs(out - ref))))

    print("KERNEL_OK")
</pallas_src>

<mosaic_0001>
module attributes {stable_mosaic.version = 11 : i64} {
  func.func @_mlp_kernel(%arg0: i32, %arg1: i32, %arg2: memref<128x256xbf16, #tpu.memory_space<vmem>>, %arg3: memref<256x512xbf16, #tpu.memory_space<vmem>>, %arg4: memref<256x256xbf16, #tpu.memory_space<vmem>>, %arg5: memref<128x256xf32, #tpu.memory_space<vmem>>, %arg6: memref<128x256xf32, #tpu.memory_space<vmem>>) attributes {dimension_semantics = [#tpu.dimension_semantics<parallel>, #tpu.dimension_semantics<arbitrary>], iteration_bounds = array<i64: 2, 2>, scalar_prefetch = 0 : i64, scratch_operands = 1 : i64, tpu.core_type = #tpu.core_type<tc>, window_params = [{transform_indices = @transform_0, window_bounds = array<i64: 128, 256>}, {transform_indices = @transform_1, window_bounds = array<i64: 256, 512>}, {transform_indices = @transform_2, window_bounds = array<i64: 256, 256>}, {transform_indices = @transform_3, window_bounds = array<i64: 128, 256>}]} {
    %c0_i32 = arith.constant 0 : i32
    %0 = arith.cmpi eq, %arg1, %c0_i32 : i32
    %1 = arith.extui %0 : i1 to i32
    %c0_i32_0 = arith.constant 0 : i32
    %2 = arith.cmpi ne, %1, %c0_i32_0 : i32
    scf.if %2 {
      %cst_13 = arith.constant 0.000000e+00 : f32
      %24 = vector.broadcast %cst_13 : f32 to vector<128x256xf32>
      %c0_14 = arith.constant 0 : index
      %c0_15 = arith.constant 0 : index
      %25 = vector.load %arg6[%c0_14, %c0_15] : memref<128x256xf32, #tpu.memory_space<vmem>>, vector<128x256xf32>
      tpu.vector_store %arg6[%c0_14, %c0_15], %24 {strides = array<i32>} : memref<128x256xf32, #tpu.memory_space<vmem>>, vector<128x256xf32>,
    } else {
    }
    %c0 = arith.constant 0 : index
    %c0_1 = arith.constant 0 : index
    %3 = vector.load %arg2[%c0, %c0_1] : memref<128x256xbf16, #tpu.memory_space<vmem>>, vector<128x256xbf16>
    %c0_2 = arith.constant 0 : index
    %c0_3 = arith.constant 0 : index
    %4 = vector.load %arg3[%c0_2, %c0_3] : memref<256x512xbf16, #tpu.memory_space<vmem>>, vector<256x512xbf16>
    %cst = arith.constant dense<0.000000e+00> : vector<128x512xf32>
    %5 = tpu.matmul %3, %4, %cst {dimension_numbers = #tpu.dot_dimension_numbers<[1], [0], [0], [1], [0, 0, 1, 1], [], []>} : vector<128x256xbf16>, vector<256x512xbf16>, vector<128x512xf32> -> vector<128x512xf32>
    %6 = vector.extract_strided_slice %5 {offsets = [0, 0], sizes = [128, 256], strides = [1, 1]} : vector<128x512xf32> to vector<128x256xf32>
    %7 = vector.extract_strided_slice %5 {offsets = [0, 256], sizes = [128, 256], strides = [1, 1]} : vector<128x512xf32> to vector<128x256xf32>
    %8 = arith.negf %6 : vector<128x256xf32>
    %9 = math.exp %8 : vector<128x256xf32>
    %cst_4 = arith.constant 1.000000e+00 : f32
    %10 = vector.broadcast %cst_4 : f32 to vector<128x256xf32>
    %11 = arith.addf %10, %9 : vector<128x256xf32>
    %12 = arith.divf %10, %11 : vector<128x256xf32>
    %13 = arith.mulf %6, %12 : vector<128x256xf32>
    %14 = arith.mulf %13, %7 : vector<128x256xf32>
    %c0_5 = arith.constant 0 : index
    %c0_6 = arith.constant 0 : index
    %15 = vector.load %arg6[%c0_5, %c0_6] : memref<128x256xf32, #tpu.memory_space<vmem>>, vector<128x256xf32>
    %16 = arith.truncf %14 : vector<128x256xf32> to vector<128x256xbf16>
    %c0_7 = arith.constant 0 : index
    %c0_8 = arith.constant 0 : index
    %17 = vector.load %arg4[%c0_7, %c0_8] : memref<256x256xbf16, #tpu.memory_space<vmem>>, vector<256x256xbf16>
    %cst_9 = arith.constant dense<0.000000e+00> : vector<128x256xf32>
    %18 = tpu.matmul %16, %17, %cst_9 {dimension_numbers = #tpu.dot_dimension_numbers<[1], [0], [0], [1], [0, 0, 1, 1], [], []>} : vector<128x256xbf16>, vector<256x256xbf16>, vector<128x256xf32> -> vector<128x256xf32>
    %19 = arith.addf %15, %18 : vector<128x256xf32>
    %c0_10 = arith.constant 0 : index
    %c0_11 = arith.constant 0 : index
    %20 = vector.load %arg6[%c0_10, %c0_11] : memref<128x256xf32, #tpu.memory_space<vmem>>, vector<128x256xf32>
    tpu.vector_store %arg6[%c0_10, %c0_11], %19 {strides = array<i32>} : memref<128x256xf32, #tpu.memory_space<vmem>>, vector<128x256xf32>,
    %c1_i32 = arith.constant 1 : i32
    %21 = arith.cmpi eq, %arg1, %c1_i32 : i32
    %22 = arith.extui %21 : i1 to i32
    %c0_i32_12 = arith.constant 0 : i32
    %23 = arith.cmpi ne, %22, %c0_i32_12 : i32
    scf.if %23 {
      %c0_13 = arith.constant 0 : index
      %c0_14 = arith.constant 0 : index
      %24 = vector.load %arg6[%c0_13, %c0_14] : memref<128x256xf32, #tpu.memory_space<vmem>>, vector<128x256xf32>
      %c0_15 = arith.constant 0 : index
      %c0_16 = arith.constant 0 : index
      %25 = vector.load %arg5[%c0_15, %c0_16] : memref<128x256xf32, #tpu.memory_space<vmem>>, vector<128x256xf32>
      tpu.vector_store %arg5[%c0_15, %c0_16], %24 {strides = array<i32>} : memref<128x256xf32, #tpu.memory_space<vmem>>, vector<128x256xf32>,
    } else {
    }
    return
  }
  func.func @transform_0(%arg0: i32, %arg1: i32) -> (i32, i32) {
    %c0_i32 = arith.constant 0 : i32
    %c0_i32_0 = arith.constant 0 : i32
    return %arg0, %c0_i32 : i32, i32
  }
  func.func @transform_1(%arg0: i32, %arg1: i32) -> (i32, i32) {
    %c0_i32 = arith.constant 0 : i32
    %c0_i32_0 = arith.constant 0 : i32
    return %c0_i32, %arg1 : i32, i32
  }
  func.func @transform_2(%arg0: i32, %arg1: i32) -> (i32, i32) {
    %c0_i32 = arith.constant 0 : i32
    %c0_i32_0 = arith.constant 0 : i32
    return %arg1, %c0_i32 : i32, i32
  }
  func.func @transform_3(%arg0: i32, %arg1: i32) -> (i32, i32) {
    %c0_i32 = arith.constant 0 : i32
    %c0_i32_0 = arith.constant 0 : i32
    return %arg0, %c0_i32 : i32, i32
  }
}

</mosaic_0001>

<llo_original>
// kernel: mlp_forward.1
$region0: #{mlp_forward.1}
  #allocation0 [shape = 'u32[]', space=smem, size = 0x4, offset = 0x4, fixed_abs, tag = 'smem constant byte address 0x4 - core index']
  #allocation1 [shape = 'u32[144,128]{1,0:T(1,128)}', space=vmem, size = 0x12000, scoped, tag = 'internal scratch']
  #allocation2 [shape = 'f32[128,256]{1,0:T(8,128)}', space=vmem, size = 0x20000, scoped, tag = 'scratch operand']
  %s0 = inlined_call_operand.vmem [shape: bf16[256,256], index: 0, kind: input, shape index: {}]
  %s1 = inlined_call_operand.hbm [shape: bf16[256,1024], index: 1, kind: input, shape index: {}]
  %s2 = inlined_call_operand.vmem [shape: bf16[512,256], index: 2, kind: input, shape index: {}]
  %s3 = inlined_call_operand.hbm [shape: f32[256,256], index: 3, kind: output, shape index: {}]
  %s4 = sld [smem:[#allocation0]]
  $region57: #{mlp_forward.1} parent=0
    _
  %s6 = ssub.s32 1, %s4
  %s7 = scalar_select 0, %s6, %s4
  $region1: #{mlp_forward.1} parent=0
    #allocation3 [shape = 'u8[524288]{0}', space=vmem, size = 0x80000, scoped, tag = 'input window, operand 1']
    #allocation4 [shape = 's32[2]{0}', space=sflag, size = 0x8, scoped, tag = 'scoped memory for mlp_forward.1']
    #allocation5 [shape = 's32[2]{0}', space=sflag, size = 0x8, scoped, tag = 'scoped memory for mlp_forward.1']
    #allocation6 [shape = 'u8[262144]{0}', space=vmem, size = 0x40000, scoped, tag = 'output window, operand 0']
    %8 = vsyncpa [#allocation4], 0
    %s9 = scalar_lea.sflag [#allocation4], 1
    %10 = vsyncpa %s9, 0
    %11 = vsyncpa [#allocation5], 0
    %s12 = scalar_lea.sflag [#allocation5], 1
    %13 = vsyncpa %s12, 0
    loop: start=0, step=1, limit=6
    $region2: #{mlp_forward.1} parent=1 // loop_pre_header
      _
    $region3: #{mlp_forward.1} parent=1 // loop_header
      %s15 = sphi 0, %s19
      %p16 = scmp.ge.s32.totalorder %s15, 6
      %s22 = sphi 0, %s34
      %s23 = sphi 0, %s30
      %s24 = sphi 0, %s22
      %s25 = sphi 0, %s23
      %s26 = sphi 0, %s24
      %s27 = sphi 0, %s25
      %s37 = sphi 0, %s39
      %s40 = sphi 0, %s37
      %s41 = sphi 0, %s40
      %s57 = sphi 0, %s41
      %s63 = sphi 0, %s65
      %s66 = sphi 0, %s63
      %s67 = sphi 0, %s66
      %s83 = sphi 0, %s67
      %s89 = sphi 0, %s91
      %s92 = sphi 0, %s89
      %s93 = sphi 0, %s92
      %s109 = sphi 0, %s93
      %s115 = sphi 0, %s117
      %s118 = sphi 0, %s115
      %s119 = sphi 0, %s118
      %s135 = sphi 0, %s119
    $region4: #{mlp_forward.1} parent=1 // loop_header_branch
      %18 = sbr.rel (%p16) target = $region8
    $region5: #{mlp_forward.1} parent=1 // loop_body
      %s20 = ssub.s32 %s15, 1
      %s21 = ssub.s32 %s15, 2
      %s28 = sadd.s32 1, %s23
      %p29 = scmp.ge.s32.totalorder %s28, 2
      %s30 = scalar_select %p29, 0, %s28
      %s31 = sadd.s32 1, %s22
      %s32 = scalar_select %p29, %s31, %s22
      %p33 = scmp.ge.s32.totalorder %s32, 2
      %s34 = scalar_select %p33, 0, %s32
      %s35 = ssub.s32 %s22, %s34
      %p36 = scmp.eq.s32.totalorder %s35, 0
      %s38 = sadd.s32 %s37, 1
      %s39 = scalar_select %p36, %s37, %s38
      %p42 = pneg %p36
      %p43 = scmp.eq.s32.totalorder %s15, 3
      %p44 = por %p42, %p43
      %p45 = scmp.ne.s32.totalorder %s37, %s40
      %p46 = scmp.eq.s32.totalorder %s15, 0
      %p47 = por %p45, %p46
      %p48 = scmp.ne.s32.totalorder %s37, %s40
      %p49 = scmp.eq.s32.totalorder %s20, 3
      %p50 = por %p48, %p49
      %p51 = scmp.ne.s32.totalorder %s40, %s41
      %p52 = scmp.eq.s32.totalorder %s20, 0
      %p53 = por %p51, %p52
      %p54 = scmp.ne.s32.totalorder %s40, %s41
      %p55 = scmp.eq.s32.totalorder %s21, 3
      %p56 = por %p54, %p55
      %p58 = scmp.ne.s32.totalorder %s41, %s57
      %p59 = scmp.eq.s32.totalorder %s21, 0
      %p60 = por %p58, %p59
      %s61 = ssub.s32 %s23, %s30
      %p62 = scmp.eq.s32.totalorder %s61, 0
      %s64 = sadd.s32 %s63, 1
      %s65 = scalar_select %p62, %s63, %s64
      %p68 = pneg %p62
      %p69 = scmp.eq.s32.totalorder %s15, 3
      %p70 = por %p68, %p69
      %p71 = scmp.ne.s32.totalorder %s63, %s66
      %p72 = scmp.eq.s32.totalorder %s15, 0
      %p73 = por %p71, %p72
      %p74 = scmp.ne.s32.totalorder %s63, %s66
      %p75 = scmp.eq.s32.totalorder %s20, 3
      %p76 = por %p74, %p75
      %p77 = scmp.ne.s32.totalorder %s66, %s67
      %p78 = scmp.eq.s32.totalorder %s20, 0
      %p79 = por %p77, %p78
      %p80 = scmp.ne.s32.totalorder %s66, %s67
      %p81 = scmp.eq.s32.totalorder %s21, 3
      %p82 = por %p80, %p81
      %p84 = scmp.ne.s32.totalorder %s67, %s83
      %p85 = scmp.eq.s32.totalorder %s21, 0
      %p86 = por %p84, %p85
      %s87 = ssub.s32 %s23, %s30
      %p88 = scmp.eq.s32.totalorder %s87, 0
      %s90 = sadd.s32 %s89, 1
      %s91 = scalar_select %p88, %s89, %s90
      %p94 = pneg %p88
      %p95 = scmp.eq.s32.totalorder %s15, 3
      %p96 = por %p94, %p95
      %p97 = scmp.ne.s32.totalorder %s89, %s92
      %p98 = scmp.eq.s32.totalorder %s15, 0
      %p99 = por %p97, %p98
      %p100 = scmp.ne.s32.totalorder %s89, %s92
      %p101 = scmp.eq.s32.totalorder %s20, 3
      %p102 = por %p100, %p101
      %p103 = scmp.ne.s32.totalorder %s92, %s93
      %p104 = scmp.eq.s32.totalorder %s20, 0
      %p105 = por %p103, %p104
      %p106 = scmp.ne.s32.totalorder %s92, %s93
      %p107 = scmp.eq.s32.totalorder %s21, 3
      %p108 = por %p106, %p107
      %p110 = scmp.ne.s32.totalorder %s93, %s109
      %p111 = scmp.eq.s32.totalorder %s21, 0
      %p112 = por %p110, %p111
      %s113 = ssub.s32 %s22, %s34
      %p114 = scmp.eq.s32.totalorder %s113, 0
      %s116 = sadd.s32 %s115, 1
      %s117 = scalar_select %p114, %s115, %s116
      %p120 = pneg %p114
      %p121 = scmp.eq.s32.totalorder %s15, 3
      %p122 = por %p120, %p121
      %p123 = scmp.ne.s32.totalorder %s115, %s118
      %p124 = scmp.eq.s32.totalorder %s15, 0
      %p125 = por %p123, %p124
      %p126 = scmp.ne.s32.totalorder %s115, %s118
      %p127 = scmp.eq.s32.totalorder %s20, 3
      %p128 = por %p126, %p127
      %p129 = scmp.ne.s32.totalorder %s118, %s119
      %p130 = scmp.eq.s32.totalorder %s20, 0
      %p131 = por %p129, %p130
      %p132 = scmp.ne.s32.totalorder %s118, %s119
      %p133 = scmp.eq.s32.totalorder %s21, 3
      %p134 = por %p132, %p133
      %p136 = scmp.ne.s32.totalorder %s119, %s135
      %p137 = scmp.eq.s32.totalorder %s21, 0
      %p138 = por %p136, %p137
      %p139 = scmp.le.s32.totalorder 1, %s15
      %p140 = scmp.lt.s32.totalorder %s15, 5
      %p141 = pnand %p139, %p140
      %p142 = pneg %p141
      // Predicated region
      $region9: #{mlp_forward.1} parent=5 // pred_check
        _
      $region10: #{mlp_forward.1} parent=5 // pred_check_branch
        %144 = sbr.rel (%p141) target = $region12
      $region11: #{mlp_forward.1} parent=5 // pred_region
        %s145 = ssub.s32 %s15, 1
      $region12: #{mlp_forward.1} parent=5 // pred_fallthru
        _
      %p146 = scmp.lt.s32.totalorder %s15, 4
      // Predicated region
      $region13: #{mlp_forward.1} parent=5 // pred_check
        %p147 = pneg %p146
      $region14: #{mlp_forward.1} parent=5 // pred_check_branch
        %149 = sbr.rel (%p147) target = $region16
      $region15: #{mlp_forward.1} parent=5 // pred_region
        // Predicated region
        $region17: #{mlp_forward.1} parent=15 // pred_check
          %p150 = pneg %p47
        $region18: #{mlp_forward.1} parent=15 // pred_check_branch
          %152 = sbr.rel (%p150) target = $region20
        $region19: #{mlp_forward.1} parent=15 // pred_region
          %s153 = smul.u32 16, %s22
          %p154 = scmp.lt.s32.totalorder %s153, 31
          %s155 = scalar_select %p154, %s153, 31
          %s156 = smul.addr %s155, 2
          %s157 = smul.addr %s156, 4
          %s158 = scalar_lea.vmem %s0, %s157
          %s159 = smul.u32 16, %s22
        $region20: #{mlp_forward.1} parent=15 // pred_fallthru
          _
        // Predicated region
        $region21: #{mlp_forward.1} parent=15 // pred_check
          %p160 = pneg %p73
        $region22: #{mlp_forward.1} parent=15 // pred_check_branch
          %162 = sbr.rel (%p160) target = $region24
        $region23: #{mlp_forward.1} parent=15 // pred_region
          %s163 = sand.u32 %s63, 1
          %s164 = scalar_lea.sflag [#allocation4], %s163
          %s165 = sand.u32 %s63, 1
          %s166 = smul.addr %s165, 512
          %s167 = scalar_lea.vmem [#allocation3], %s166
          %s168 = smul.u32 4, %s23
          %s170 = ssub.s32 8192, 8192
          %171 = vsyncadd %s164, %s170
          %s172 = smul.addr %s168, 64
          %s173 = scalar_lea.hbm %s1, %s172
          %s174 = sshll.u32 %s167, 4
          %s175 = int_to_ptr.vmem [resolvable:$true] %s174
          %180 = dma.hbm_to_vmem [thread:$0]  %s173, 8192, %s175, %s164, 512, 256, 16
        $region24: #{mlp_forward.1} parent=15 // pred_fallthru
          _
        // Predicated region
        $region25: #{mlp_forward.1} parent=15 // pred_check
          %p181 = pneg %p99
        $region26: #{mlp_forward.1} parent=15 // pred_check_branch
          %183 = sbr.rel (%p181) target = $region28
        $region27: #{mlp_forward.1} parent=15 // pred_region
          %s184 = smul.u32 32, %s23
          %p185 = scmp.lt.s32.totalorder %s184, 63
          %s186 = scalar_select %p185, %s184, 63
          %s187 = smul.addr %s186, 2
          %s188 = smul.addr %s187, 4
          %s189 = scalar_lea.vmem %s2, %s188
          %s190 = smul.u32 32, %s23
        $region28: #{mlp_forward.1} parent=15 // pred_fallthru
          _
      $region16: #{mlp_forward.1} parent=5 // pred_fallthru
        _
      %p191 = scmp.le.s32.totalorder 1, %s15
      %p192 = scmp.lt.s32.totalorder %s15, 5
      %p193 = pnand %p191, %p192
      %p194 = pneg %p193
      // Predicated region
      $region29: #{mlp_forward.1} parent=5 // pred_check
        _
      $region30: #{mlp_forward.1} parent=5 // pred_check_branch
        %196 = sbr.rel (%p193) target = $region32
      $region31: #{mlp_forward.1} parent=5 // pred_region
        %s197 = ssub.s32 %s15, 1
        %s198 = sand.u32 %s66, 1
        %s199 = scalar_lea.sflag [#allocation4], %s198
        %s200 = sand.u32 %s66, 1
        %s201 = smul.addr %s200, 512
        %s202 = scalar_lea.vmem [#allocation3], %s201
        // Predicated region
        $region33: #{mlp_forward.1} parent=31 // pred_check
          %p203 = pneg %p79
        $region34: #{mlp_forward.1} parent=31 // pred_check_branch
          %205 = sbr.rel (%p203) target = $region36
        $region35: #{mlp_forward.1} parent=31 // pred_region
          %206 = dma.done %s199, 8192
        $region36: #{mlp_forward.1} parent=31 // pred_fallthru
          _
        %s207 = smul.u32 16, %s24
        %p208 = scmp.lt.s32.totalorder %s207, 31
        %s209 = scalar_select %p208, %s207, 31
        %s210 = smul.addr %s209, 2
        %s211 = smul.addr %s210, 4
        %s212 = scalar_lea.vmem %s0, %s211
        %p213 = pneg %p53
        %p214 = pneg %p50
        %s215 = sand.u32 %s66, 1
        %s216 = scalar_lea.sflag [#allocation4], %s215
        %s217 = sand.u32 %s66, 1
        %s218 = smul.addr %s217, 512
        %s219 = scalar_lea.vmem [#allocation3], %s218
        %p220 = pneg %p79
        %p221 = pneg %p76
        %s222 = smul.u32 32, %s25
        %p223 = scmp.lt.s32.totalorder %s222, 63
        %s224 = scalar_select %p223, %s222, 63
        %s225 = smul.addr %s224, 2
        %s226 = smul.addr %s225, 4
        %s227 = scalar_lea.vmem %s2, %s226
        %p228 = pneg %p105
        %p229 = pneg %p102
        %p230 = pneg %p131
        %p231 = pneg %p128
        %s232 = sand.u32 %s118, 1
        %s233 = scalar_lea.sflag [#allocation5], %s232
        %s234 = sand.u32 %s118, 1
        %s235 = smul.addr %s234, 256
        %s236 = scalar_lea.vmem [#allocation6], %s235
        %s237 = smul.u32 16, %s24
        %p238 = scmp.lt.s32.totalorder %s237, 31
        %s239 = scalar_select %p238, %s237, 31
        %s240 = smul.addr %s239, 2
        %s241 = smul.addr %s240, 4
        %s242 = scalar_lea.vmem %s0, %s241
        %s243 = smul.u32 16, %s24
        %s244 = smul.u32 4, %s25
        %s245 = smul.u32 32, %s25
        %p246 = scmp.lt.s32.totalorder %s245, 63
        %s247 = scalar_select %p246, %s245, 63
        %s248 = smul.addr %s247, 2
        %s249 = smul.addr %s248, 4
        %s250 = scalar_lea.vmem %s2, %s249
        %s251 = smul.u32 32, %s25
        %s252 = smul.u32 16, %s24
        %p253 = scmp.eq.s32.totalorder %s25, 0
        // Predicated region
        $region37: #{mlp_forward.1} parent=31 // pred_check
          %p254 = pneg %p253
        $region38: #{mlp_forward.1} parent=31 // pred_check_branch
          %256 = sbr.rel (%p254) target = $region40
        $region39: #{mlp_forward.1} parent=31 // pred_region
          %257 = vst [vmem:[#allocation2] sm:$0xff] 0.0
          %258 = vst [vmem:[#allocation2 + $0x8] sm:$0xff] 0.0
          %259 = vst [vmem:[#allocation2 + $0x10] sm:$0xff] 0.0
          %260 = vst [vmem:[#allocation2 + $0x18] sm:$0xff] 0.0
          %261 = vst [vmem:[#allocation2 + $0x20] sm:$0xff] 0.0
          %262 = vst [vmem:[#allocation2 + $0x28] sm:$0xff] 0.0
          %263 = vst [vmem:[#allocation2 + $0x30] sm:$0xff] 0.0
          %264 = vst [vmem:[#allocation2 + $0x38] sm:$0xff] 0.0
          %265 = vst [vmem:[#allocation2 + $0x40] sm:$0xff] 0.0
          %266 = vst [vmem:[#allocation2 + $0x48] sm:$0xff] 0.0
          %267 = vst [vmem:[#allocation2 + $0x50] sm:$0xff] 0.0
          %268 = vst [vmem:[#allocation2 + $0x58] sm:$0xff] 0.0
          %269 = vst [vmem:[#allocation2 + $0x60] sm:$0xff] 0.0
          %270 = vst [vmem:[#allocation2 + $0x68] sm:$0xff] 0.0
          %271 = vst [vmem:[#allocation2 + $0x70] sm:$0xff] 0.0
          %272 = vst [vmem:[#allocation2 + $0x78] sm:$0xff] 0.0
          %273 = vst [vmem:[#allocation2 + $0x80] sm:$0xff] 0.0
          %274 = vst [vmem:[#allocation2 + $0x88] sm:$0xff] 0.0
          %275 = vst [vmem:[#allocation2 + $0x90] sm:$0xff] 0.0
          %276 = vst [vmem:[#allocation2 + $0x98] sm:$0xff] 0.0
          %277 = vst [vmem:[#allocation2 + $0xa0] sm:$0xff] 0.0
          %278 = vst [vmem:[#allocation2 + $0xa8] sm:$0xff] 0.0
          %279 = vst [vmem:[#allocation2 + $0xb0] sm:$0xff] 0.0
          %280 = vst [vmem:[#allocation2 + $0xb8] sm:$0xff] 0.0
          %281 = vst [vmem:[#allocation2 + $0xc0] sm:$0xff] 0.0
          %282 = vst [vmem:[#allocation2 + $0xc8] sm:$0xff] 0.0
          %283 = vst [vmem:[#allocation2 + $0xd0] sm:$0xff] 0.0
          %284 = vst [vmem:[#allocation2 + $0xd8] sm:$0xff] 0.0
          %285 = vst [vmem:[#allocation2 + $0xe0] sm:$0xff] 0.0
          %286 = vst [vmem:[#allocation2 + $0xe8] sm:$0xff] 0.0
          %287 = vst [vmem:[#allocation2 + $0xf0] sm:$0xff] 0.0
          %288 = vst [vmem:[#allocation2 + $0xf8] sm:$0xff] 0.0
        $region40: #{mlp_forward.1} parent=31 // pred_fallthru
          _
        %v289 = vld [vmem:[%s242] sm:$0xff]
        %v290 = vld [vmem:[%s242 + $0x8] sm:$0xff]
        %v291 = vld [vmem:[%s242 + $0x10] sm:$0xff]
        %v292 = vld [vmem:[%s242 + $0x18] sm:$0xff]
        %v293 = vld [vmem:[%s242 + $0x20] sm:$0xff]
        %v294 = vld [vmem:[%s242 + $0x28] sm:$0xff]
        %v295 = vld [vmem:[%s242 + $0x30] sm:$0xff]
        %v296 = vld [vmem:[%s242 + $0x38] sm:$0xff]
        %v297 = vld [vmem:[%s242 + $0x40] sm:$0xff]
        %v298 = vld [vmem:[%s242 + $0x48] sm:$0xff]
        %v299 = vld [vmem:[%s242 + $0x50] sm:$0xff]
        %v300 = vld [vmem:[%s242 + $0x58] sm:$0xff]
        %v301 = vld [vmem:[%s242 + $0x60] sm:$0xff]
        %v302 = vld [vmem:[%s242 + $0x68] sm:$0xff]
        %v303 = vld [vmem:[%s242 + $0x70] sm:$0xff]
        %v304 = vld [vmem:[%s242 + $0x78] sm:$0xff]
        %v305 = vld [vmem:[%s202] sm:$0xff]
        %v306 = vld [vmem:[%s202 + $0x8] sm:$0xff]
        %v307 = vld [vmem:[%s202 + $0x10] sm:$0xff]
        %v308 = vld [vmem:[%s202 + $0x18] sm:$0xff]
        %v309 = vld [vmem:[%s202 + $0x20] sm:$0xff]
        %v310 = vld [vmem:[%s202 + $0x28] sm:$0xff]
        %v311 = vld [vmem:[%s202 + $0x30] sm:$0xff]
        %v312 = vld [vmem:[%s202 + $0x38] sm:$0xff]
        %v313 = vld [vmem:[%s202 + $0x40] sm:$0xff]
        %v314 = vld [vmem:[%s202 + $0x48] sm:$0xff]
        %v315 = vld [vmem:[%s202 + $0x50] sm:$0xff]
        %v316 = vld [vmem:[%s202 + $0x58] sm:$0xff]
        %v317 = vld [vmem:[%s202 + $0x60] sm:$0xff]
        %v318 = vld [vmem:[%s202 + $0x68] sm:$0xff]
        %v319 = vld [vmem:[%s202 + $0x70] sm:$0xff]
        %v320 = vld [vmem:[%s202 + $0x78] sm:$0xff]
        %v321 = vld [vmem:[%s202 + $0x80] sm:$0xff]
        %v322 = vld [vmem:[%s202 + $0x88] sm:$0xff]
        %v323 = vld [vmem:[%s202 + $0x90] sm:$0xff]
        %v324 = vld [vmem:[%s202 + $0x98] sm:$0xff]
        %v325 = vld [vmem:[%s202 + $0xa0] sm:$0xff]
        %v326 = vld [vmem:[%s202 + $0xa8] sm:$0xff]
        %v327 = vld [vmem:[%s202 + $0xb0] sm:$0xff]
        %v328 = vld [vmem:[%s202 + $0xb8] sm:$0xff]
        %v329 = vld [vmem:[%s202 + $0xc0] sm:$0xff]
        %v330 = vld [vmem:[%s202 + $0xc8] sm:$0xff]
        %v331 = vld [vmem:[%s202 + $0xd0] sm:$0xff]
        %v332 = vld [vmem:[%s202 + $0xd8] sm:$0xff]
        %v333 = vld [vmem:[%s202 + $0xe0] sm:$0xff]
        %v334 = vld [vmem:[%s202 + $0xe8] sm:$0xff]
        %v335 = vld [vmem:[%s202 + $0xf0] sm:$0xff]
        %v336 = vld [vmem:[%s202 + $0xf8] sm:$0xff]
        %v337 = vld [vmem:[%s202 + $0x100] sm:$0xff]
        %v338 = vld [vmem:[%s202 + $0x108] sm:$0xff]
        %v339 = vld [vmem:[%s202 + $0x110] sm:$0xff]
        %v340 = vld [vmem:[%s202 + $0x118] sm:$0xff]
        %v341 = vld [vmem:[%s202 + $0x120] sm:$0xff]
        %v342 = vld [vmem:[%s202 + $0x128] sm:$0xff]
        %v343 = vld [vmem:[%s202 + $0x130] sm:$0xff]
        %v344 = vld [vmem:[%s202 + $0x138] sm:$0xff]
        %v345 = vld [vmem:[%s202 + $0x140] sm:$0xff]
        %v346 = vld [vmem:[%s202 + $0x148] sm:$0xff]
        %v347 = vld [vmem:[%s202 + $0x150] sm:$0xff]
        %v348 = vld [vmem:[%s202 + $0x158] sm:$0xff]
        %v349 = vld [vmem:[%s202 + $0x160] sm:$0xff]
        %v350 = vld [vmem:[%s202 + $0x168] sm:$0xff]
        %v351 = vld [vmem:[%s202 + $0x170] sm:$0xff]
        %v352 = vld [vmem:[%s202 + $0x178] sm:$0xff]
        %v353 = vld [vmem:[%s202 + $0x180] sm:$0xff]
        %v354 = vld [vmem:[%s202 + $0x188] sm:$0xff]
        %v355 = vld [vmem:[%s202 + $0x190] sm:$0xff]
        %v356 = vld [vmem:[%s202 + $0x198] sm:$0xff]
        %v357 = vld [vmem:[%s202 + $0x1a0] sm:$0xff]
        %v358 = vld [vmem:[%s202 + $0x1a8] sm:$0xff]
        %v359 = vld [vmem:[%s202 + $0x1b0] sm:$0xff]
        %v360 = vld [vmem:[%s202 + $0x1b8] sm:$0xff]
        %v361 = vld [vmem:[%s202 + $0x1c0] sm:$0xff]
        %v362 = vld [vmem:[%s202 + $0x1c8] sm:$0xff]
        %v363 = vld [vmem:[%s202 + $0x1d0] sm:$0xff]
        %v364 = vld [vmem:[%s202 + $0x1d8] sm:$0xff]
        %v365 = vld [vmem:[%s202 + $0x1e0] sm:$0xff]
        %v366 = vld [vmem:[%s202 + $0x1e8] sm:$0xff]
        %v367 = vld [vmem:[%s202 + $0x1f0] sm:$0xff]
        %v368 = vld [vmem:[%s202 + $0x1f8] sm:$0xff]
        %v385 = vunpack.c.l.b16 %v289
        %v386 = vunpack.c.h.b16 %v289
        %v387 = vunpack.c.l.b16 %v290
        %v388 = vunpack.c.h.b16 %v290
        %v389 = vunpack.c.l.b16 %v291
        %v390 = vunpack.c.h.b16 %v291
        %v391 = vunpack.c.l.b16 %v292
        %v392 = vunpack.c.h.b16 %v292
        %v393 = vunpack.c.l.b16 %v293
        %v394 = vunpack.c.h.b16 %v293
        %v395 = vunpack.c.l.b16 %v294
        %v396 = vunpack.c.h.b16 %v294
        %v397 = vunpack.c.l.b16 %v295
        %v398 = vunpack.c.h.b16 %v295
        %v399 = vunpack.c.l.b16 %v296
        %v400 = vunpack.c.h.b16 %v296
        %v401 = vunpack.c.l.b16 %v297
        %v402 = vunpack.c.h.b16 %v297
        %v403 = vunpack.c.l.b16 %v298
        %v404 = vunpack.c.h.b16 %v298
        %v405 = vunpack.c.l.b16 %v299
        %v406 = vunpack.c.h.b16 %v299
        %v407 = vunpack.c.l.b16 %v300
        %v408 = vunpack.c.h.b16 %v300
        %v409 = vunpack.c.l.b16 %v301
        %v410 = vunpack.c.h.b16 %v301
        %v411 = vunpack.c.l.b16 %v302
        %v412 = vunpack.c.h.b16 %v302
        %v413 = vunpack.c.l.b16 %v303
        %v414 = vunpack.c.h.b16 %v303
        %v415 = vunpack.c.l.b16 %v304
        %v416 = vunpack.c.h.b16 %v304
        %v417 = vpack.c.b16 %v387, %v385
        %v418 = vpack.c.b16 %v388, %v386
        %v419 = vpack.c.b16 %v391, %v389
        %v420 = vpack.c.b16 %v392, %v390
        %v421 = vpack.c.b16 %v395, %v393
        %v422 = vpack.c.b16 %v396, %v394
        %v423 = vpack.c.b16 %v399, %v397
        %v424 = vpack.c.b16 %v400, %v398
        %v425 = vpack.c.b16 %v403, %v401
        %v426 = vpack.c.b16 %v404, %v402
        %v427 = vpack.c.b16 %v407, %v405
        %v428 = vpack.c.b16 %v408, %v406
        %v429 = vpack.c.b16 %v411, %v409
        %v430 = vpack.c.b16 %v412, %v410
        %v431 = vpack.c.b16 %v415, %v413
        %v432 = vpack.c.b16 %v416, %v414
        %v513 = vunpack.c.l.b16 %v305
        %v514 = vunpack.c.h.b16 %v305
        %v515 = vunpack.c.l.b16 %v306
        %v516 = vunpack.c.h.b16 %v306
        %v517 = vunpack.c.l.b16 %v307
        %v518 = vunpack.c.h.b16 %v307
        %v519 = vunpack.c.l.b16 %v308
        %v520 = vunpack.c.h.b16 %v308
        %v521 = vunpack.c.l.b16 %v309
        %v522 = vunpack.c.h.b16 %v309
        %v523 = vunpack.c.l.b16 %v310
        %v524 = vunpack.c.h.b16 %v310
        %v525 = vunpack.c.l.b16 %v311
        %v526 = vunpack.c.h.b16 %v311
        %v527 = vunpack.c.l.b16 %v312
        %v528 = vunpack.c.h.b16 %v312
        %v529 = vunpack.c.l.b16 %v313
        %v530 = vunpack.c.h.b16 %v313
        %v531 = vunpack.c.l.b16 %v314
        %v532 = vunpack.c.h.b16 %v314
        %v533 = vunpack.c.l.b16 %v315
        %v534 = vunpack.c.h.b16 %v315
        %v535 = vunpack.c.l.b16 %v316
        %v536 = vunpack.c.h.b16 %v316
        %v537 = vunpack.c.l.b16 %v317
        %v538 = vunpack.c.h.b16 %v317
        %v539 = vunpack.c.l.b16 %v318
        %v540 = vunpack.c.h.b16 %v318
        %v541 = vunpack.c.l.b16 %v319
        %v542 = vunpack.c.h.b16 %v319
        %v543 = vunpack.c.l.b16 %v320
        %v544 = vunpack.c.h.b16 %v320
        %v545 = vunpack.c.l.b16 %v321
        %v546 = vunpack.c.h.b16 %v321
        %v547 = vunpack.c.l.b16 %v322
        %v548 = vunpack.c.h.b16 %v322
        %v549 = vunpack.c.l.b16 %v323
        %v550 = vunpack.c.h.b16 %v323
        %v551 = vunpack.c.l.b16 %v324
        %v552 = vunpack.c.h.b16 %v324
        %v553 = vunpack.c.l.b16 %v325
        %v554 = vunpack.c.h.b16 %v325
        %v555 = vunpack.c.l.b16 %v326
        %v556 = vunpack.c.h.b16 %v326
        %v557 = vunpack.c.l.b16 %v327
        %v558 = vunpack.c.h.b16 %v327
        %v559 = vunpack.c.l.b16 %v328
        %v560 = vunpack.c.h.b16 %v328
        %v561 = vunpack.c.l.b16 %v329
        %v562 = vunpack.c.h.b16 %v329
        %v563 = vunpack.c.l.b16 %v330
        %v564 = vunpack.c.h.b16 %v330
        %v565 = vunpack.c.l.b16 %v331
        %v566 = vunpack.c.h.b16 %v331
        %v567 = vunpack.c.l.b16 %v332
        %v568 = vunpack.c.h.b16 %v332
        %v569 = vunpack.c.l.b16 %v333
        %v570 = vunpack.c.h.b16 %v333
        %v571 = vunpack.c.l.b16 %v334
        %v572 = vunpack.c.h.b16 %v334
        %v573 = vunpack.c.l.b16 %v335
        %v574 = vunpack.c.h.b16 %v335
        %v575 = vunpack.c.l.b16 %v336
        %v576 = vunpack.c.h.b16 %v336
        %v577 = vunpack.c.l.b16 %v337
        %v578 = vunpack.c.h.b16 %v337
        %v579 = vunpack.c.l.b16 %v338
        %v580 = vunpack.c.h.b16 %v338
        %v581 = vunpack.c.l.b16 %v339
        %v582 = vunpack.c.h.b16 %v339
        %v583 = vunpack.c.l.b16 %v340
        %v584 = vunpack.c.h.b16 %v340
        %v585 = vunpack.c.l.b16 %v341
        %v586 = vunpack.c.h.b16 %v341
        %v587 = vunpack.c.l.b16 %v342
        %v588 = vunpack.c.h.b16 %v342
        %v589 = vunpack.c.l.b16 %v343
        %v590 = vunpack.c.h.b16 %v343
        %v591 = vunpack.c.l.b16 %v344
        %v592 = vunpack.c.h.b16 %v344
        %v593 = vunpack.c.l.b16 %v345
        %v594 = vunpack.c.h.b16 %v345
        %v595 = vunpack.c.l.b16 %v346
        %v596 = vunpack.c.h.b16 %v346
        %v597 = vunpack.c.l.b16 %v347
        %v598 = vunpack.c.h.b16 %v347
        %v599 = vunpack.c.l.b16 %v348
        %v600 = vunpack.c.h.b16 %v348
        %v601 = vunpack.c.l.b16 %v349
        %v602 = vunpack.c.h.b16 %v349
        %v603 = vunpack.c.l.b16 %v350
        %v604 = vunpack.c.h.b16 %v350
        %v605 = vunpack.c.l.b16 %v351
        %v606 = vunpack.c.h.b16 %v351
        %v607 = vunpack.c.l.b16 %v352
        %v608 = vunpack.c.h.b16 %v352
        %v609 = vunpack.c.l.b16 %v353
        %v610 = vunpack.c.h.b16 %v353
        %v611 = vunpack.c.l.b16 %v354
        %v612 = vunpack.c.h.b16 %v354
        %v613 = vunpack.c.l.b16 %v355
        %v614 = vunpack.c.h.b16 %v355
        %v615 = vunpack.c.l.b16 %v356
        %v616 = vunpack.c.h.b16 %v356
        %v617 = vunpack.c.l.b16 %v357
        %v618 = vunpack.c.h.b16 %v357
        %v619 = vunpack.c.l.b16 %v358
        %v620 = vunpack.c.h.b16 %v358
        %v621 = vunpack.c.l.b16 %v359
        %v622 = vunpack.c.h.b16 %v359
        %v623 = vunpack.c.l.b16 %v360
        %v624 = vunpack.c.h.b16 %v360
        %v625 = vunpack.c.l.b16 %v361
        %v626 = vunpack.c.h.b16 %v361
        %v627 = vunpack.c.l.b16 %v362
        %v628 = vunpack.c.h.b16 %v362
        %v629 = vunpack.c.l.b16 %v363
        %v630 = vunpack.c.h.b16 %v363
        %v631 = vunpack.c.l.b16 %v364
        %v632 = vunpack.c.h.b16 %v364
        %v633 = vunpack.c.l.b16 %v365
        %v634 = vunpack.c.h.b16 %v365
        %v635 = vunpack.c.l.b16 %v366
        %v636 = vunpack.c.h.b16 %v366
        %v637 = vunpack.c.l.b16 %v367
        %v638 = vunpack.c.h.b16 %v367
        %v639 = vunpack.c.l.b16 %v368
        %v640 = vunpack.c.h.b16 %v368
        %v641 = vpack.c.b16 %v517, %v513
        %v642 = vpack.c.b16 %v518, %v514
        %v643 = vpack.c.b16 %v519, %v515
        %v644 = vpack.c.b16 %v520, %v516
        %v645 = vpack.c.b16 %v525, %v521
        %v646 = vpack.c.b16 %v526, %v522
        %v647 = vpack.c.b16 %v527, %v523
        %v648 = vpack.c.b16 %v528, %v524
        %v649 = vpack.c.b16 %v533, %v529
        %v650 = vpack.c.b16 %v534, %v530
        %v651 = vpack.c.b16 %v535, %v531
        %v652 = vpack.c.b16 %v536, %v532
        %v653 = vpack.c.b16 %v541, %v537
        %v654 = vpack.c.b16 %v542, %v538
        %v655 = vpack.c.b16 %v543, %v539
        %v656 = vpack.c.b16 %v544, %v540
        %v657 = vpack.c.b16 %v549, %v545
        %v658 = vpack.c.b16 %v550, %v546
        %v659 = vpack.c.b16 %v551, %v547
        %v660 = vpack.c.b16 %v552, %v548
        %v661 = vpack.c.b16 %v557, %v553
        %v662 = vpack.c.b16 %v558, %v554
        %v663 = vpack.c.b16 %v559, %v555
        %v664 = vpack.c.b16 %v560, %v556
        %v665 = vpack.c.b16 %v565, %v561
        %v666 = vpack.c.b16 %v566, %v562
        %v667 = vpack.c.b16 %v567, %v563
        %v668 = vpack.c.b16 %v568, %v564
        %v669 = vpack.c.b16 %v573, %v569
        %v670 = vpack.c.b16 %v574, %v570
        %v671 = vpack.c.b16 %v575, %v571
        %v672 = vpack.c.b16 %v576, %v572
        %v673 = vpack.c.b16 %v581, %v577
        %v674 = vpack.c.b16 %v582, %v578
        %v675 = vpack.c.b16 %v583, %v579
        %v676 = vpack.c.b16 %v584, %v580
        %v677 = vpack.c.b16 %v589, %v585
        %v678 = vpack.c.b16 %v590, %v586
        %v679 = vpack.c.b16 %v591, %v587
        %v680 = vpack.c.b16 %v592, %v588
        %v681 = vpack.c.b16 %v597, %v593
        %v682 = vpack.c.b16 %v598, %v594
        %v683 = vpack.c.b16 %v599, %v595
        %v684 = vpack.c.b16 %v600, %v596
        %v685 = vpack.c.b16 %v605, %v601
        %v686 = vpack.c.b16 %v606, %v602
        %v687 = vpack.c.b16 %v607, %v603
        %v688 = vpack.c.b16 %v608, %v604
        %v689 = vpack.c.b16 %v613, %v609
        %v690 = vpack.c.b16 %v614, %v610
        %v691 = vpack.c.b16 %v615, %v611
        %v692 = vpack.c.b16 %v616, %v612
        %v693 = vpack.c.b16 %v621, %v617
        %v694 = vpack.c.b16 %v622, %v618
        %v695 = vpack.c.b16 %v623, %v619
        %v696 = vpack.c.b16 %v624, %v620
        %v697 = vpack.c.b16 %v629, %v625
        %v698 = vpack.c.b16 %v630, %v626
        %v699 = vpack.c.b16 %v631, %v627
        %v700 = vpack.c.b16 %v632, %v628
        %v701 = vpack.c.b16 %v637, %v633
        %v702 = vpack.c.b16 %v638, %v634
        %v703 = vpack.c.b16 %v639, %v635
        %v704 = vpack.c.b16 %v640, %v636
        %769 = vmatprep.subr.bf16.mxu0 %v642
        %770 = vmatpush1.bf16.msra.mxu0 %v641
        %771 = vmatprep.subr.bf16.mxu0 %v646
        %772 = vmatpush1.bf16.msra.mxu0 %v645
        %773 = vmatprep.subr.bf16.mxu0 %v650
        %774 = vmatpush1.bf16.msra.mxu0 %v649
        %775 = vmatprep.subr.bf16.mxu0 %v654
        %776 = vmatpush1.bf16.msra.mxu0 %v653
        %777 = vmatprep.subr.bf16.mxu0 %v658
        %778 = vmatpush1.bf16.msra.mxu0 %v657
        %779 = vmatprep.subr.bf16.mxu0 %v662
        %780 = vmatpush1.bf16.msra.mxu0 %v661
        %781 = vmatprep.subr.bf16.mxu0 %v666
        %782 = vmatpush1.bf16.msra.mxu0 %v665
        %783 = vmatprep.subr.bf16.mxu0 %v670
        %784 = vmatpush1.bf16.msra.mxu0 %v669
        %785 = vmatprep.subr.bf16.mxu0 %v674
        %786 = vmatpush1.bf16.msra.mxu0 %v673
        %787 = vmatprep.subr.bf16.mxu0 %v678
        %788 = vmatpush1.bf16.msra.mxu0 %v677
        %789 = vmatprep.subr.bf16.mxu0 %v682
        %790 = vmatpush1.bf16.msra.mxu0 %v681
        %791 = vmatprep.subr.bf16.mxu0 %v686
        %792 = vmatpush1.bf16.msra.mxu0 %v685
        %793 = vmatprep.subr.bf16.mxu0 %v690
        %794 = vmatpush1.bf16.msra.mxu0 %v689
        %795 = vmatprep.subr.bf16.mxu0 %v694
        %796 = vmatpush1.bf16.msra.mxu0 %v693
        %797 = vmatprep.subr.bf16.mxu0 %v698
        %798 = vmatpush1.bf16.msra.mxu0 %v697
        %799 = vmatprep.subr.bf16.mxu0 %v702
        %800 = vmatpush1.bf16.msra.mxu0 %v701
        %801 = vmatprep.mubr.bf16.mxu0 %v418
        %802 = vmatmul.mubr.bf16.gmra.mrb[0].mxu0 %v417
        %v803 = vpop.f32.mrb[0].mxu0
        %v804 = vadd.f32 0.0, %v803
        %v805 = vpop.f32.mrb[0].mxu0
        %v806 = vadd.f32 0.0, %v805
        %v807 = vpop.f32.mrb[0].mxu0
        %v808 = vadd.f32 0.0, %v807
        %v809 = vpop.f32.mrb[0].mxu0
        %v810 = vadd.f32 0.0, %v809
        %811 = vmatprep.mubr.bf16.mxu0 %v420
        %812 = vmatmul.mubr.bf16.gmra.mrb[0].mxu0 %v419
        %v813 = vpop.f32.mrb[0].mxu0
        %v814 = vadd.f32 0.0, %v813
        %v815 = vpop.f32.mrb[0].mxu0
        %v816 = vadd.f32 0.0, %v815
        %v817 = vpop.f32.mrb[0].mxu0
        %v818 = vadd.f32 0.0, %v817
        %v819 = vpop.f32.mrb[0].mxu0
        %v820 = vadd.f32 0.0, %v819
        %821 = vmatprep.mubr.bf16.mxu0 %v422
        %822 = vmatmul.mubr.bf16.gmra.mrb[0].mxu0 %v421
        %v823 = vpop.f32.mrb[0].mxu0
        %v824 = vadd.f32 0.0, %v823
        %v825 = vpop.f32.mrb[0].mxu0
        %v826 = vadd.f32 0.0, %v825
        %v827 = vpop.f32.mrb[0].mxu0
        %v828 = vadd.f32 0.0, %v827
        %v829 = vpop.f32.mrb[0].mxu0
        %v830 = vadd.f32 0.0, %v829
        %831 = vmatprep.mubr.bf16.mxu0 %v424
        %832 = vmatmul.mubr.bf16.gmra.mrb[0].mxu0 %v423
        %v833 = vpop.f32.mrb[0].mxu0
        %v834 = vadd.f32 0.0, %v833
        %v835 = vpop.f32.mrb[0].mxu0
        %v836 = vadd.f32 0.0, %v835
        %v837 = vpop.f32.mrb[0].mxu0
        %v838 = vadd.f32 0.0, %v837
        %v839 = vpop.f32.mrb[0].mxu0
        %v840 = vadd.f32 0.0, %v839
        %841 = vmatprep.mubr.bf16.mxu0 %v426
        %842 = vmatmul.mubr.bf16.gmra.mrb[0].mxu0 %v425
        %v843 = vpop.f32.mrb[0].mxu0
        %v844 = vadd.f32 0.0, %v843
        %v845 = vpop.f32.mrb[0].mxu0
        %v846 = vadd.f32 0.0, %v845
        %v847 = vpop.f32.mrb[0].mxu0
        %v848 = vadd.f32 0.0, %v847
        %v849 = vpop.f32.mrb[0].mxu0
        %v850 = vadd.f32 0.0, %v849
        %851 = vmatprep.mubr.bf16.mxu0 %v428
        %852 = vmatmul.mubr.bf16.gmra.mrb[0].mxu0 %v427
        %v853 = vpop.f32.mrb[0].mxu0
        %v854 = vadd.f32 0.0, %v853
        %v855 = vpop.f32.mrb[0].mxu0
        %v856 = vadd.f32 0.0, %v855
        %v857 = vpop.f32.mrb[0].mxu0
        %v858 = vadd.f32 0.0, %v857
        %v859 = vpop.f32.mrb[0].mxu0
        %v860 = vadd.f32 0.0, %v859
        %861 = vmatprep.mubr.bf16.mxu0 %v430
        %862 = vmatmul.mubr.bf16.gmra.mrb[0].mxu0 %v429
        %v863 = vpop.f32.mrb[0].mxu0
        %v864 = vadd.f32 0.0, %v863
        %v865 = vpop.f32.mrb[0].mxu0
        %v866 = vadd.f32 0.0, %v865
        %v867 = vpop.f32.mrb[0].mxu0
        %v868 = vadd.f32 0.0, %v867
        %v869 = vpop.f32.mrb[0].mxu0
        %v870 = vadd.f32 0.0, %v869
        %871 = vmatprep.mubr.bf16.mxu0 %v432
        %872 = vmatmul.mubr.bf16.gmra.mrb[0].mxu0 %v431
        %v873 = vpop.f32.mrb[0].mxu0
        %v874 = vadd.f32 0.0, %v873
        %v875 = vpop.f32.mrb[0].mxu0
        %v876 = vadd.f32 0.0, %v875
        %v877 = vpop.f32.mrb[0].mxu0
        %v878 = vadd.f32 0.0, %v877
        %v879 = vpop.f32.mrb[0].mxu0
        %v880 = vadd.f32 0.0, %v879
        %881 = vdwg.mxu0
        %882 = vmatprep.subr.bf16.mxu0 %v644
        %883 = vmatpush1.bf16.msra.mxu0 %v643
        %884 = vmatprep.subr.bf16.mxu0 %v648
        %885 = vmatpush1.bf16.msra.mxu0 %v647
        %886 = vmatprep.subr.bf16.mxu0 %v652
        %887 = vmatpush1.bf16.msra.mxu0 %v651
        %888 = vmatprep.subr.bf16.mxu0 %v656
        %889 = vmatpush1.bf16.msra.mxu0 %v655
        %890 = vmatprep.subr.bf16.mxu0 %v660
        %891 = vmatpush1.bf16.msra.mxu0 %v659
        %892 = vmatprep.subr.bf16.mxu0 %v664
        %893 = vmatpush1.bf16.msra.mxu0 %v663
        %894 = vmatprep.subr.bf16.mxu0 %v668
        %895 = vmatpush1.bf16.msra.mxu0 %v667
        %896 = vmatprep.subr.bf16.mxu0 %v672
        %897 = vmatpush1.bf16.msra.mxu0 %v671
        %898 = vmatprep.subr.bf16.mxu0 %v676
        %899 = vmatpush1.bf16.msra.mxu0 %v675
        %900 = vmatprep.subr.bf16.mxu0 %v680
        %901 = vmatpush1.bf16.msra.mxu0 %v679
        %902 = vmatprep.subr.bf16.mxu0 %v684
        %903 = vmatpush1.bf16.msra.mxu0 %v683
        %904 = vmatprep.subr.bf16.mxu0 %v688
        %905 = vmatpush1.bf16.msra.mxu0 %v687
        %906 = vmatprep.subr.bf16.mxu0 %v692
        %907 = vmatpush1.bf16.msra.mxu0 %v691
        %908 = vmatprep.subr.bf16.mxu0 %v696
        %909 = vmatpush1.bf16.msra.mxu0 %v695
        %910 = vmatprep.subr.bf16.mxu0 %v700
        %911 = vmatpush1.bf16.msra.mxu0 %v699
        %912 = vmatprep.subr.bf16.mxu0 %v704
        %913 = vmatpush1.bf16.msra.mxu0 %v703
        %914 = vmatprep.mubr.bf16.mxu0 %v418
        %915 = vmatmul.mubr.bf16.gmra.mrb[0].mxu0 %v417
        %v916 = vpop.f32.mrb[0].mxu0
        %v917 = vadd.f32 0.0, %v916
        %v918 = vpop.f32.mrb[0].mxu0
        %v919 = vadd.f32 0.0, %v918
        %v920 = vpop.f32.mrb[0].mxu0
        %v921 = vadd.f32 0.0, %v920
        %v922 = vpop.f32.mrb[0].mxu0
        %v923 = vadd.f32 0.0, %v922
        %924 = vmatprep.mubr.bf16.mxu0 %v420
        %925 = vmatmul.mubr.bf16.gmra.mrb[0].mxu0 %v419
        %v926 = vpop.f32.mrb[0].mxu0
        %v927 = vadd.f32 0.0, %v926
        %v928 = vpop.f32.mrb[0].mxu0
        %v929 = vadd.f32 0.0, %v928
        %v930 = vpop.f32.mrb[0].mxu0
        %v931 = vadd.f32 0.0, %v930
        %v932 = vpop.f32.mrb[0].mxu0
        %v933 = vadd.f32 0.0, %v932
        %934 = vmatprep.mubr.bf16.mxu0 %v422
        %935 = vmatmul.mubr.bf16.gmra.mrb[0].mxu0 %v421
        %v936 = vpop.f32.mrb[0].mxu0
        %v937 = vadd.f32 0.0, %v936
        %v938 = vpop.f32.mrb[0].mxu0
        %v939 = vadd.f32 0.0, %v938
        %v940 = vpop.f32.mrb[0].mxu0
        %v941 = vadd.f32 0.0, %v940
        %v942 = vpop.f32.mrb[0].mxu0
        %v943 = vadd.f32 0.0, %v942
        %944 = vmatprep.mubr.bf16.mxu0 %v424
        %945 = vmatmul.mubr.bf16.gmra.mrb[0].mxu0 %v423
        %v946 = vpop.f32.mrb[0].mxu0
        %v947 = vadd.f32 0.0, %v946
        %v948 = vpop.f32.mrb[0].mxu0
        %v949 = vadd.f32 0.0, %v948
        %v950 = vpop.f32.mrb[0].mxu0
        %v951 = vadd.f32 0.0, %v950
        %v952 = vpop.f32.mrb[0].mxu0
        %v953 = vadd.f32 0.0, %v952
        %954 = vmatprep.mubr.bf16.mxu0 %v426
        %955 = vmatmul.mubr.bf16.gmra.mrb[0].mxu0 %v425
        %v956 = vpop.f32.mrb[0].mxu0
        %v957 = vadd.f32 0.0, %v956
        %v958 = vpop.f32.mrb[0].mxu0
        %v959 = vadd.f32 0.0, %v958
        %v960 = vpop.f32.mrb[0].mxu0
        %v961 = vadd.f32 0.0, %v960
        %v962 = vpop.f32.mrb[0].mxu0
        %v963 = vadd.f32 0.0, %v962
        %964 = vmatprep.mubr.bf16.mxu0 %v428
        %965 = vmatmul.mubr.bf16.gmra.mrb[0].mxu0 %v427
        %v966 = vpop.f32.mrb[0].mxu0
        %v967 = vadd.f32 0.0, %v966
        %v968 = vpop.f32.mrb[0].mxu0
        %v969 = vadd.f32 0.0, %v968
        %v970 = vpop.f32.mrb[0].mxu0
        %v971 = vadd.f32 0.0, %v970
        %v972 = vpop.f32.mrb[0].mxu0
        %v973 = vadd.f32 0.0, %v972
        %974 = vmatprep.mubr.bf16.mxu0 %v430
        %975 = vmatmul.mubr.bf16.gmra.mrb[0].mxu0 %v429
        %v976 = vpop.f32.mrb[0].mxu0
        %v977 = vadd.f32 0.0, %v976
        %v978 = vpop.f32.mrb[0].mxu0
        %v979 = vadd.f32 0.0, %v978
        %v980 = vpop.f32.mrb[0].mxu0
        %v981 = vadd.f32 0.0, %v980
        %v982 = vpop.f32.mrb[0].mxu0
        %v983 = vadd.f32 0.0, %v982
        %984 = vmatprep.mubr.bf16.mxu0 %v432
        %985 = vmatmul.mubr.bf16.gmra.mrb[0].mxu0 %v431
        %v986 = vpop.f32.mrb[0].mxu0
        %v987 = vadd.f32 0.0, %v986
        %v988 = vpop.f32.mrb[0].mxu0
        %v989 = vadd.f32 0.0, %v988
        %v990 = vpop.f32.mrb[0].mxu0
        %v991 = vadd.f32 0.0, %v990
        %v992 = vpop.f32.mrb[0].mxu0
        %v993 = vadd.f32 0.0, %v992
        %994 = vdwg.mxu0
        %v995 = vxor.u32 %v804, 2147483648
        %v996 = vxor.u32 %v806, 2147483648
        %v997 = vxor.u32 %v808, 2147483648
        %v998 = vxor.u32 %v810, 2147483648
        %v999 = vxor.u32 %v814, 2147483648
        %v1000 = vxor.u32 %v816, 2147483648
        %v1001 = vxor.u32 %v818, 2147483648
        %v1002 = vxor.u32 %v820, 2147483648
        %v1003 = vxor.u32 %v824, 2147483648
        %v1004 = vxor.u32 %v826, 2147483648
        %v1005 = vxor.u32 %v828, 2147483648
        %v1006 = vxor.u32 %v830, 2147483648
        %v1007 = vxor.u32 %v834, 2147483648
        %v1008 = vxor.u32 %v836, 2147483648
        %v1009 = vxor.u32 %v838, 2147483648
        %v1010 = vxor.u32 %v840, 2147483648
        %v1011 = vxor.u32 %v844, 2147483648
        %v1012 = vxor.u32 %v846, 2147483648
        %v1013 = vxor.u32 %v848, 2147483648
        %v1014 = vxor.u32 %v850, 2147483648
        %v1015 = vxor.u32 %v854, 2147483648
        %v1016 = vxor.u32 %v856, 2147483648
        %v1017 = vxor.u32 %v858, 2147483648
        %v1018 = vxor.u32 %v860, 2147483648
        %v1019 = vxor.u32 %v864, 2147483648
        %v1020 = vxor.u32 %v866, 2147483648
        %v1021 = vxor.u32 %v868, 2147483648
        %v1022 = vxor.u32 %v870, 2147483648
        %v1023 = vxor.u32 %v874, 2147483648
        %v1024 = vxor.u32 %v876, 2147483648
        %v1025 = vxor.u32 %v878, 2147483648
        %v1026 = vxor.u32 %v880, 2147483648
        %v1027 = vmul.f32 %v995, 1.442695
        %v1028 = vpow.pop %v1027
        %v1029 = vmul.f32 %v996, 1.442695
        %v1030 = vpow.pop %v1029
        %v1031 = vmul.f32 %v997, 1.442695
        %v1032 = vpow.pop %v1031
        %v1033 = vmul.f32 %v998, 1.442695
        %v1034 = vpow.pop %v1033
        %v1035 = vmul.f32 %v999, 1.442695
        %v1036 = vpow.pop %v1035
        %v1037 = vmul.f32 %v1000, 1.442695
        %v1038 = vpow.pop %v1037
        %v1039 = vmul.f32 %v1001, 1.442695
        %v1040 = vpow.pop %v1039
        %v1041 = vmul.f32 %v1002, 1.442695
        %v1042 = vpow.pop %v1041
        %v1043 = vmul.f32 %v1003, 1.442695
        %v1044 = vpow.pop %v1043
        %v1045 = vmul.f32 %v1004, 1.442695
        %v1046 = vpow.pop %v1045
        %v1047 = vmul.f32 %v1005, 1.442695
        %v1048 = vpow.pop %v1047
        %v1049 = vmul.f32 %v1006, 1.442695
        %v1050 = vpow.pop %v1049
        %v1051 = vmul.f32 %v1007, 1.442695
        %v1052 = vpow.pop %v1051
        %v1053 = vmul.f32 %v1008, 1.442695
        %v1054 = vpow.pop %v1053
        %v1055 = vmul.f32 %v1009, 1.442695
        %v1056 = vpow.pop %v1055
        %v1057 = vmul.f32 %v1010, 1.442695
        %v1058 = vpow.pop %v1057
        %v1059 = vmul.f32 %v1011, 1.442695
        %v1060 = vpow.pop %v1059
        %v1061 = vmul.f32 %v1012, 1.442695
        %v1062 = vpow.pop %v1061
        %v1063 = vmul.f32 %v1013, 1.442695
        %v1064 = vpow.pop %v1063
        %v1065 = vmul.f32 %v1014, 1.442695
        %v1066 = vpow.pop %v1065
        %v1067 = vmul.f32 %v1015, 1.442695
        %v1068 = vpow.pop %v1067
        %v1069 = vmul.f32 %v1016, 1.442695
        %v1070 = vpow.pop %v1069
        %v1071 = vmul.f32 %v1017, 1.442695
        %v1072 = vpow.pop %v1071
        %v1073 = vmul.f32 %v1018, 1.442695
        %v1074 = vpow.pop %v1073
        %v1075 = vmul.f32 %v1019, 1.442695
        %v1076 = vpow.pop %v1075
        %v1077 = vmul.f32 %v1020, 1.442695
        %v1078 = vpow.pop %v1077
        %v1079 = vmul.f32 %v1021, 1.442695
        %v1080 = vpow.pop %v1079
        %v1081 = vmul.f32 %v1022, 1.442695
        %v1082 = vpow.pop %v1081
        %v1083 = vmul.f32 %v1023, 1.442695
        %v1084 = vpow.pop %v1083
        %v1085 = vmul.f32 %v1024, 1.442695
        %v1086 = vpow.pop %v1085
        %v1087 = vmul.f32 %v1025, 1.442695
        %v1088 = vpow.pop %v1087
        %v1089 = vmul.f32 %v1026, 1.442695
        %v1090 = vpow.pop %v1089
        %v1091 = vadd.f32 %v1028, 1.0
        %v1092 = vadd.f32 %v1030, 1.0
        %v1093 = vadd.f32 %v1032, 1.0
        %v1094 = vadd.f32 %v1034, 1.0
        %v1095 = vadd.f32 %v1036, 1.0
        %v1096 = vadd.f32 %v1038, 1.0
        %v1097 = vadd.f32 %v1040, 1.0
        %v1098 = vadd.f32 %v1042, 1.0
        %v1099 = vadd.f32 %v1044, 1.0
        %v1100 = vadd.f32 %v1046, 1.0
        %v1101 = vadd.f32 %v1048, 1.0
        %v1102 = vadd.f32 %v1050, 1.0
        %v1103 = vadd.f32 %v1052, 1.0
        %v1104 = vadd.f32 %v1054, 1.0
        %v1105 = vadd.f32 %v1056, 1.0
        %v1106 = vadd.f32 %v1058, 1.0
        %v1107 = vadd.f32 %v1060, 1.0
        %v1108 = vadd.f32 %v1062, 1.0
        %v1109 = vadd.f32 %v1064, 1.0
        %v1110 = vadd.f32 %v1066, 1.0
        %v1111 = vadd.f32 %v1068, 1.0
        %v1112 = vadd.f32 %v1070, 1.0
        %v1113 = vadd.f32 %v1072, 1.0
        %v1114 = vadd.f32 %v1074, 1.0
        %v1115 = vadd.f32 %v1076, 1.0
        %v1116 = vadd.f32 %v1078, 1.0
        %v1117 = vadd.f32 %v1080, 1.0
        %v1118 = vadd.f32 %v1082, 1.0
        %v1119 = vadd.f32 %v1084, 1.0
        %v1120 = vadd.f32 %v1086, 1.0
        %v1121 = vadd.f32 %v1088, 1.0
        %v1122 = vadd.f32 %v1090, 1.0
        %v1123 = vrcp.pop %v1091
        %v1124 = vmul.f32 1.0, %v1123
        %v1125 = vrcp.pop %v1092
        %v1126 = vmul.f32 1.0, %v1125
        %v1127 = vrcp.pop %v1093
        %v1128 = vmul.f32 1.0, %v1127
        %v1129 = vrcp.pop %v1094
        %v1130 = vmul.f32 1.0, %v1129
        %v1131 = vrcp.pop %v1095
        %v1132 = vmul.f32 1.0, %v1131
        %v1133 = vrcp.pop %v1096
        %v1134 = vmul.f32 1.0, %v1133
        %v1135 = vrcp.pop %v1097
        %v1136 = vmul.f32 1.0, %v1135
        %v1137 = vrcp.pop %v1098
        %v1138 = vmul.f32 1.0, %v1137
        %v1139 = vrcp.pop %v1099
        %v1140 = vmul.f32 1.0, %v1139
        %v1141 = vrcp.pop %v1100
        %v1142 = vmul.f32 1.0, %v1141
        %v1143 = vrcp.pop %v1101
        %v1144 = vmul.f32 1.0, %v1143
        %v1145 = vrcp.pop %v1102
        %v1146 = vmul.f32 1.0, %v1145
        %v1147 = vrcp.pop %v1103
        %v1148 = vmul.f32 1.0, %v1147
        %v1149 = vrcp.pop %v1104
        %v1150 = vmul.f32 1.0, %v1149
        %v1151 = vrcp.pop %v1105
        %v1152 = vmul.f32 1.0, %v1151
        %v1153 = vrcp.pop %v1106
        %v1154 = vmul.f32 1.0, %v1153
        %v1155 = vrcp.pop %v1107
        %v1156 = vmul.f32 1.0, %v1155
        %v1157 = vrcp.pop %v1108
        %v1158 = vmul.f32 1.0, %v1157
        %v1159 = vrcp.pop %v1109
        %v1160 = vmul.f32 1.0, %v1159
        %v1161 = vrcp.pop %v1110
        %v1162 = vmul.f32 1.0, %v1161
        %v1163 = vrcp.pop %v1111
        %v1164 = vmul.f32 1.0, %v1163
        %v1165 = vrcp.pop %v1112
        %v1166 = vmul.f32 1.0, %v1165
        %v1167 = vrcp.pop %v1113
        %v1168 = vmul.f32 1.0, %v1167
        %v1169 = vrcp.pop %v1114
        %v1170 = vmul.f32 1.0, %v1169
        %v1171 = vrcp.pop %v1115
        %v1172 = vmul.f32 1.0, %v1171
        %v1173 = vrcp.pop %v1116
        %v1174 = vmul.f32 1.0, %v1173
        %v1175 = vrcp.pop %v1117
        %v1176 = vmul.f32 1.0, %v1175
        %v1177 = vrcp.pop %v1118
        %v1178 = vmul.f32 1.0, %v1177
        %v1179 = vrcp.pop %v1119
        %v1180 = vmul.f32 1.0, %v1179
        %v1181 = vrcp.pop %v1120
        %v1182 = vmul.f32 1.0, %v1181
        %v1183 = vrcp.pop %v1121
        %v1184 = vmul.f32 1.0, %v1183
        %v1185 = vrcp.pop %v1122
        %v1186 = vmul.f32 1.0, %v1185
        %v1187 = vmul.f32 %v804, %v1124
        %v1188 = vmul.f32 %v806, %v1126
        %v1189 = vmul.f32 %v808, %v1128
        %v1190 = vmul.f32 %v810, %v1130
        %v1191 = vmul.f32 %v814, %v1132
        %v1192 = vmul.f32 %v816, %v1134
        %v1193 = vmul.f32 %v818, %v1136
        %v1194 = vmul.f32 %v820, %v1138
        %v1195 = vmul.f32 %v824, %v1140
        %v1196 = vmul.f32 %v826, %v1142
        %v1197 = vmul.f32 %v828, %v1144
        %v1198 = vmul.f32 %v830, %v1146
        %v1199 = vmul.f32 %v834, %v1148
        %v1200 = vmul.f32 %v836, %v1150
        %v1201 = vmul.f32 %v838, %v1152
        %v1202 = vmul.f32 %v840, %v1154
        %v1203 = vmul.f32 %v844, %v1156
        %v1204 = vmul.f32 %v846, %v1158
        %v1205 = vmul.f32 %v848, %v1160
        %v1206 = vmul.f32 %v850, %v1162
        %v1207 = vmul.f32 %v854, %v1164
        %v1208 = vmul.f32 %v856, %v1166
        %v1209 = vmul.f32 %v858, %v1168
        %v1210 = vmul.f32 %v860, %v1170
        %v1211 = vmul.f32 %v864, %v1172
        %v1212 = vmul.f32 %v866, %v1174
        %v1213 = vmul.f32 %v868, %v1176
        %v1214 = vmul.f32 %v870, %v1178
        %v1215 = vmul.f32 %v874, %v1180
        %v1216 = vmul.f32 %v876, %v1182
        %v1217 = vmul.f32 %v878, %v1184
        %v1218 = vmul.f32 %v880, %v1186
        %v1219 = vmul.f32 %v1187, %v917
        %v1220 = vmul.f32 %v1188, %v919
        %v1221 = vmul.f32 %v1189, %v921
        %v1222 = vmul.f32 %v1190, %v923
        %v1223 = vmul.f32 %v1191, %v927
        %v1224 = vmul.f32 %v1192, %v929
        %v1225 = vmul.f32 %v1193, %v931
        %v1226 = vmul.f32 %v1194, %v933
        %v1227 = vmul.f32 %v1195, %v937
        %v1228 = vmul.f32 %v1196, %v939
        %v1229 = vmul.f32 %v1197, %v941
        %v1230 = vmul.f32 %v1198, %v943
        %v1231 = vmul.f32 %v1199, %v947
        %v1232 = vmul.f32 %v1200, %v949
        %v1233 = vmul.f32 %v1201, %v951
        %v1234 = vmul.f32 %v1202, %v953
        %v1235 = vmul.f32 %v1203, %v957
        %v1236 = vmul.f32 %v1204, %v959
        %v1237 = vmul.f32 %v1205, %v961
        %v1238 = vmul.f32 %v1206, %v963
        %v1239 = vmul.f32 %v1207, %v967
        %v1240 = vmul.f32 %v1208, %v969
        %v1241 = vmul.f32 %v1209, %v971
        %v1242 = vmul.f32 %v1210, %v973
        %v1243 = vmul.f32 %v1211, %v977
        %v1244 = vmul.f32 %v1212, %v979
        %v1245 = vmul.f32 %v1213, %v981
        %v1246 = vmul.f32 %v1214, %v983
        %v1247 = vmul.f32 %v1215, %v987
        %v1248 = vmul.f32 %v1216, %v989
        %v1249 = vmul.f32 %v1217, %v991
        %v1250 = vmul.f32 %v1218, %v993
        %v1251 = vld [vmem:[#allocation2] sm:$0xff]
        %v1252 = vld [vmem:[#allocation2 + $0x8] sm:$0xff]
        %v1253 = vld [vmem:[#allocation2 + $0x10] sm:$0xff]
        %v1254 = vld [vmem:[#allocation2 + $0x18] sm:$0xff]
        %v1255 = vld [vmem:[#allocation2 + $0x20] sm:$0xff]
        %v1256 = vld [vmem:[#allocation2 + $0x28] sm:$0xff]
        %v1257 = vld [vmem:[#allocation2 + $0x30] sm:$0xff]
        %v1258 = vld [vmem:[#allocation2 + $0x38] sm:$0xff]
        %v1259 = vld [vmem:[#allocation2 + $0x40] sm:$0xff]
        %v1260 = vld [vmem:[#allocation2 + $0x48] sm:$0xff]
        %v1261 = vld [vmem:[#allocation2 + $0x50] sm:$0xff]
        %v1262 = vld [vmem:[#allocation2 + $0x58] sm:$0xff]
        %v1263 = vld [vmem:[#allocation2 + $0x60] sm:$0xff]
        %v1264 = vld [vmem:[#allocation2 + $0x68] sm:$0xff]
        %v1265 = vld [vmem:[#allocation2 + $0x70] sm:$0xff]
        %v1266 = vld [vmem:[#allocation2 + $0x78] sm:$0xff]
        %v1267 = vld [vmem:[#allocation2 + $0x80] sm:$0xff]
        %v1268 = vld [vmem:[#allocation2 + $0x88] sm:$0xff]
        %v1269 = vld [vmem:[#allocation2 + $0x90] sm:$0xff]
        %v1270 = vld [vmem:[#allocation2 + $0x98] sm:$0xff]
        %v1271 = vld [vmem:[#allocation2 + $0xa0] sm:$0xff]
        %v1272 = vld [vmem:[#allocation2 + $0xa8] sm:$0xff]
        %v1273 = vld [vmem:[#allocation2 + $0xb0] sm:$0xff]
        %v1274 = vld [vmem:[#allocation2 + $0xb8] sm:$0xff]
        %v1275 = vld [vmem:[#allocation2 + $0xc0] sm:$0xff]
        %v1276 = vld [vmem:[#allocation2 + $0xc8] sm:$0xff]
        %v1277 = vld [vmem:[#allocation2 + $0xd0] sm:$0xff]
        %v1278 = vld [vmem:[#allocation2 + $0xd8] sm:$0xff]
        %v1279 = vld [vmem:[#allocation2 + $0xe0] sm:$0xff]
        %v1280 = vld [vmem:[#allocation2 + $0xe8] sm:$0xff]
        %v1281 = vld [vmem:[#allocation2 + $0xf0] sm:$0xff]
        %v1282 = vld [vmem:[#allocation2 + $0xf8] sm:$0xff]
        %v1283 = vpack.c.bf16 %v1221, %v1219
        %v1284 = vpack.c.bf16 %v1222, %v1220
        %v1285 = vpack.c.bf16 %v1225, %v1223
        %v1286 = vpack.c.bf16 %v1226, %v1224
        %v1287 = vpack.c.bf16 %v1229, %v1227
        %v1288 = vpack.c.bf16 %v1230, %v1228
        %v1289 = vpack.c.bf16 %v1233, %v1231
        %v1290 = vpack.c.bf16 %v1234, %v1232
        %v1291 = vpack.c.bf16 %v1237, %v1235
        %v1292 = vpack.c.bf16 %v1238, %v1236
        %v1293 = vpack.c.bf16 %v1241, %v1239
        %v1294 = vpack.c.bf16 %v1242, %v1240
        %v1295 = vpack.c.bf16 %v1245, %v1243
        %v1296 = vpack.c.bf16 %v1246, %v1244
        %v1297 = vpack.c.bf16 %v1249, %v1247
        %v1298 = vpack.c.bf16 %v1250, %v1248
        %v1299 = vld [vmem:[%s250] sm:$0xff]
        %v1300 = vld [vmem:[%s250 + $0x8] sm:$0xff]
        %v1301 = vld [vmem:[%s250 + $0x10] sm:$0xff]
        %v1302 = vld [vmem:[%s250 + $0x18] sm:$0xff]
        %v1303 = vld [vmem:[%s250 + $0x20] sm:$0xff]
        %v1304 = vld [vmem:[%s250 + $0x28] sm:$0xff]
        %v1305 = vld [vmem:[%s250 + $0x30] sm:$0xff]
        %v1306 = vld [vmem:[%s250 + $0x38] sm:$0xff]
        %v1307 = vld [vmem:[%s250 + $0x40] sm:$0xff]
        %v1308 = vld [vmem:[%s250 + $0x48] sm:$0xff]
        %v1309 = vld [vmem:[%s250 + $0x50] sm:$0xff]
        %v1310 = vld [vmem:[%s250 + $0x58] sm:$0xff]
        %v1311 = vld [vmem:[%s250 + $0x60] sm:$0xff]
        %v1312 = vld [vmem:[%s250 + $0x68] sm:$0xff]
        %v1313 = vld [vmem:[%s250 + $0x70] sm:$0xff]
        %v1314 = vld [vmem:[%s250 + $0x78] sm:$0xff]
        %v1315 = vld [vmem:[%s250 + $0x80] sm:$0xff]
        %v1316 = vld [vmem:[%s250 + $0x88] sm:$0xff]
        %v1317 = vld [vmem:[%s250 + $0x90] sm:$0xff]
        %v1318 = vld [vmem:[%s250 + $0x98] sm:$0xff]
        %v1319 = vld [vmem:[%s250 + $0xa0] sm:$0xff]
        %v1320 = vld [vmem:[%s250 + $0xa8] sm:$0xff]
        %v1321 = vld [vmem:[%s250 + $0xb0] sm:$0xff]
        %v1322 = vld [vmem:[%s250 + $0xb8] sm:$0xff]
        %v1323 = vld [vmem:[%s250 + $0xc0] sm:$0xff]
        %v1324 = vld [vmem:[%s250 + $0xc8] sm:$0xff]
        %v1325 = vld [vmem:[%s250 + $0xd0] sm:$0xff]
        %v1326 = vld [vmem:[%s250 + $0xd8] sm:$0xff]
        %v1327 = vld [vmem:[%s250 + $0xe0] sm:$0xff]
        %v1328 = vld [vmem:[%s250 + $0xe8] sm:$0xff]
        %v1329 = vld [vmem:[%s250 + $0xf0] sm:$0xff]
        %v1330 = vld [vmem:[%s250 + $0xf8] sm:$0xff]
        %v1363 = vunpack.c.l.b16 %v1299
        %v1364 = vunpack.c.h.b16 %v1299
        %v1365 = vunpack.c.l.b16 %v1300
        %v1366 = vunpack.c.h.b16 %v1300
        %v1367 = vunpack.c.l.b16 %v1301
        %v1368 = vunpack.c.h.b16 %v1301
        %v1369 = vunpack.c.l.b16 %v1302
        %v1370 = vunpack.c.h.b16 %v1302
        %v1371 = vunpack.c.l.b16 %v1303
        %v1372 = vunpack.c.h.b16 %v1303
        %v1373 = vunpack.c.l.b16 %v1304
        %v1374 = vunpack.c.h.b16 %v1304
        %v1375 = vunpack.c.l.b16 %v1305
        %v1376 = vunpack.c.h.b16 %v1305
        %v1377 = vunpack.c.l.b16 %v1306
        %v1378 = vunpack.c.h.b16 %v1306
        %v1379 = vunpack.c.l.b16 %v1307
        %v1380 = vunpack.c.h.b16 %v1307
        %v1381 = vunpack.c.l.b16 %v1308
        %v1382 = vunpack.c.h.b16 %v1308
        %v1383 = vunpack.c.l.b16 %v1309
        %v1384 = vunpack.c.h.b16 %v1309
        %v1385 = vunpack.c.l.b16 %v1310
        %v1386 = vunpack.c.h.b16 %v1310
        %v1387 = vunpack.c.l.b16 %v1311
        %v1388 = vunpack.c.h.b16 %v1311
        %v1389 = vunpack.c.l.b16 %v1312
        %v1390 = vunpack.c.h.b16 %v1312
        %v1391 = vunpack.c.l.b16 %v1313
        %v1392 = vunpack.c.h.b16 %v1313
        %v1393 = vunpack.c.l.b16 %v1314
        %v1394 = vunpack.c.h.b16 %v1314
        %v1395 = vunpack.c.l.b16 %v1315
        %v1396 = vunpack.c.h.b16 %v1315
        %v1397 = vunpack.c.l.b16 %v1316
        %v1398 = vunpack.c.h.b16 %v1316
        %v1399 = vunpack.c.l.b16 %v1317
        %v1400 = vunpack.c.h.b16 %v1317
        %v1401 = vunpack.c.l.b16 %v1318
        %v1402 = vunpack.c.h.b16 %v1318
        %v1403 = vunpack.c.l.b16 %v1319
        %v1404 = vunpack.c.h.b16 %v1319
        %v1405 = vunpack.c.l.b16 %v1320
        %v1406 = vunpack.c.h.b16 %v1320
        %v1407 = vunpack.c.l.b16 %v1321
        %v1408 = vunpack.c.h.b16 %v1321
        %v1409 = vunpack.c.l.b16 %v1322
        %v1410 = vunpack.c.h.b16 %v1322
        %v1411 = vunpack.c.l.b16 %v1323
        %v1412 = vunpack.c.h.b16 %v1323
        %v1413 = vunpack.c.l.b16 %v1324
        %v1414 = vunpack.c.h.b16 %v1324
        %v1415 = vunpack.c.l.b16 %v1325
        %v1416 = vunpack.c.h.b16 %v1325
        %v1417 = vunpack.c.l.b16 %v1326
        %v1418 = vunpack.c.h.b16 %v1326
        %v1419 = vunpack.c.l.b16 %v1327
        %v1420 = vunpack.c.h.b16 %v1327
        %v1421 = vunpack.c.l.b16 %v1328
        %v1422 = vunpack.c.h.b16 %v1328
        %v1423 = vunpack.c.l.b16 %v1329
        %v1424 = vunpack.c.h.b16 %v1329
        %v1425 = vunpack.c.l.b16 %v1330
        %v1426 = vunpack.c.h.b16 %v1330
        %v1427 = vpack.c.b16 %v1365, %v1363
        %v1428 = vpack.c.b16 %v1366, %v1364
        %v1429 = vpack.c.b16 %v1369, %v1367
        %v1430 = vpack.c.b16 %v1370, %v1368
        %v1431 = vpack.c.b16 %v1373, %v1371
        %v1432 = vpack.c.b16 %v1374, %v1372
        %v1433 = vpack.c.b16 %v1377, %v1375
        %v1434 = vpack.c.b16 %v1378, %v1376
        %v1435 = vpack.c.b16 %v1381, %v1379
        %v1436 = vpack.c.b16 %v1382, %v1380
        %v1437 = vpack.c.b16 %v1385, %v1383
        %v1438 = vpack.c.b16 %v1386, %v1384
        %v1439 = vpack.c.b16 %v1389, %v1387
        %v1440 = vpack.c.b16 %v1390, %v1388
        %v1441 = vpack.c.b16 %v1393, %v1391
        %v1442 = vpack.c.b16 %v1394, %v1392
        %v1443 = vpack.c.b16 %v1397, %v1395
        %v1444 = vpack.c.b16 %v1398, %v1396
        %v1445 = vpack.c.b16 %v1401, %v1399
        %v1446 = vpack.c.b16 %v1402, %v1400
        %v1447 = vpack.c.b16 %v1405, %v1403
        %v1448 = vpack.c.b16 %v1406, %v1404
        %v1449 = vpack.c.b16 %v1409, %v1407
        %v1450 = vpack.c.b16 %v1410, %v1408
        %v1451 = vpack.c.b16 %v1413, %v1411
        %v1452 = vpack.c.b16 %v1414, %v1412
        %v1453 = vpack.c.b16 %v1417, %v1415
        %v1454 = vpack.c.b16 %v1418, %v1416
        %v1455 = vpack.c.b16 %v1421, %v1419
        %v1456 = vpack.c.b16 %v1422, %v1420
        %v1457 = vpack.c.b16 %v1425, %v1423
        %v1458 = vpack.c.b16 %v1426, %v1424
        %1491 = vmatprep.subr.bf16.mxu0 %v1428
        %1492 = vmatpush1.bf16.msra.mxu0 %v1427
        %1493 = vmatprep.subr.bf16.mxu0 %v1430
        %1494 = vmatpush1.bf16.msra.mxu0 %v1429
        %1495 = vmatprep.subr.bf16.mxu0 %v1432
        %1496 = vmatpush1.bf16.msra.mxu0 %v1431
        %1497 = vmatprep.subr.bf16.mxu0 %v1434
        %1498 = vmatpush1.bf16.msra.mxu0 %v1433
        %1499 = vmatprep.subr.bf16.mxu0 %v1436
        %1500 = vmatpush1.bf16.msra.mxu0 %v1435
        %1501 = vmatprep.subr.bf16.mxu0 %v1438
        %1502 = vmatpush1.bf16.msra.mxu0 %v1437
        %1503 = vmatprep.subr.bf16.mxu0 %v1440
        %1504 = vmatpush1.bf16.msra.mxu0 %v1439
        %1505 = vmatprep.subr.bf16.mxu0 %v1442
        %1506 = vmatpush1.bf16.msra.mxu0 %v1441
        %1507 = vmatprep.subr.bf16.mxu0 %v1444
        %1508 = vmatpush1.bf16.msra.mxu0 %v1443
        %1509 = vmatprep.subr.bf16.mxu0 %v1446
        %1510 = vmatpush1.bf16.msra.mxu0 %v1445
        %1511 = vmatprep.subr.bf16.mxu0 %v1448
        %1512 = vmatpush1.bf16.msra.mxu0 %v1447
        %1513 = vmatprep.subr.bf16.mxu0 %v1450
        %1514 = vmatpush1.bf16.msra.mxu0 %v1449
        %1515 = vmatprep.subr.bf16.mxu0 %v1452
        %1516 = vmatpush1.bf16.msra.mxu0 %v1451
        %1517 = vmatprep.subr.bf16.mxu0 %v1454
        %1518 = vmatpush1.bf16.msra.mxu0 %v1453
        %1519 = vmatprep.subr.bf16.mxu0 %v1456
        %1520 = vmatpush1.bf16.msra.mxu0 %v1455
        %1521 = vmatprep.subr.bf16.mxu0 %v1458
        %1522 = vmatpush1.bf16.msra.mxu0 %v1457
        %1523 = vmatprep.mubr.bf16.mxu0 %v1284
        %1524 = vmatmul.mubr.bf16.gmra.mrb[0].mxu0 %v1283
        %v1525 = vpop.f32.mrb[0].mxu0
        %v1526 = vadd.f32 0.0, %v1525
        %v1527 = vpop.f32.mrb[0].mxu0
        %v1528 = vadd.f32 0.0, %v1527
        %v1529 = vpop.f32.mrb[0].mxu0
        %v1530 = vadd.f32 0.0, %v1529
        %v1531 = vpop.f32.mrb[0].mxu0
        %v1532 = vadd.f32 0.0, %v1531
        %1533 = vmatprep.mubr.bf16.mxu0 %v1286
        %1534 = vmatmul.mubr.bf16.gmra.mrb[0].mxu0 %v1285
        %v1535 = vpop.f32.mrb[0].mxu0
        %v1536 = vadd.f32 0.0, %v1535
        %v1537 = vpop.f32.mrb[0].mxu0
        %v1538 = vadd.f32 0.0, %v1537
        %v1539 = vpop.f32.mrb[0].mxu0
        %v1540 = vadd.f32 0.0, %v1539
        %v1541 = vpop.f32.mrb[0].mxu0
        %v1542 = vadd.f32 0.0, %v1541
        %1543 = vmatprep.mubr.bf16.mxu0 %v1288
        %1544 = vmatmul.mubr.bf16.gmra.mrb[0].mxu0 %v1287
        %v1545 = vpop.f32.mrb[0].mxu0
        %v1546 = vadd.f32 0.0, %v1545
        %v1547 = vpop.f32.mrb[0].mxu0
        %v1548 = vadd.f32 0.0, %v1547
        %v1549 = vpop.f32.mrb[0].mxu0
        %v1550 = vadd.f32 0.0, %v1549
        %v1551 = vpop.f32.mrb[0].mxu0
        %v1552 = vadd.f32 0.0, %v1551
        %1553 = vmatprep.mubr.bf16.mxu0 %v1290
        %1554 = vmatmul.mubr.bf16.gmra.mrb[0].mxu0 %v1289
        %v1555 = vpop.f32.mrb[0].mxu0
        %v1556 = vadd.f32 0.0, %v1555
        %v1557 = vpop.f32.mrb[0].mxu0
        %v1558 = vadd.f32 0.0, %v1557
        %v1559 = vpop.f32.mrb[0].mxu0
        %v1560 = vadd.f32 0.0, %v1559
        %v1561 = vpop.f32.mrb[0].mxu0
        %v1562 = vadd.f32 0.0, %v1561
        %1563 = vmatprep.mubr.bf16.mxu0 %v1292
        %1564 = vmatmul.mubr.bf16.gmra.mrb[0].mxu0 %v1291
        %v1565 = vpop.f32.mrb[0].mxu0
        %v1566 = vadd.f32 0.0, %v1565
        %v1567 = vpop.f32.mrb[0].mxu0
        %v1568 = vadd.f32 0.0, %v1567
        %v1569 = vpop.f32.mrb[0].mxu0
        %v1570 = vadd.f32 0.0, %v1569
        %v1571 = vpop.f32.mrb[0].mxu0
        %v1572 = vadd.f32 0.0, %v1571
        %1573 = vmatprep.mubr.bf16.mxu0 %v1294
        %1574 = vmatmul.mubr.bf16.gmra.mrb[0].mxu0 %v1293
        %v1575 = vpop.f32.mrb[0].mxu0
        %v1576 = vadd.f32 0.0, %v1575
        %v1577 = vpop.f32.mrb[0].mxu0
        %v1578 = vadd.f32 0.0, %v1577
        %v1579 = vpop.f32.mrb[0].mxu0
        %v1580 = vadd.f32 0.0, %v1579
        %v1581 = vpop.f32.mrb[0].mxu0
        %v1582 = vadd.f32 0.0, %v1581
        %1583 = vmatprep.mubr.bf16.mxu0 %v1296
        %1584 = vmatmul.mubr.bf16.gmra.mrb[0].mxu0 %v1295
        %v1585 = vpop.f32.mrb[0].mxu0
        %v1586 = vadd.f32 0.0, %v1585
        %v1587 = vpop.f32.mrb[0].mxu0
        %v1588 = vadd.f32 0.0, %v1587
        %v1589 = vpop.f32.mrb[0].mxu0
        %v1590 = vadd.f32 0.0, %v1589
        %v1591 = vpop.f32.mrb[0].mxu0
        %v1592 = vadd.f32 0.0, %v1591
        %1593 = vmatprep.mubr.bf16.mxu0 %v1298
        %1594 = vmatmul.mubr.bf16.gmra.mrb[0].mxu0 %v1297
        %v1595 = vpop.f32.mrb[0].mxu0
        %v1596 = vadd.f32 0.0, %v1595
        %v1597 = vpop.f32.mrb[0].mxu0
        %v1598 = vadd.f32 0.0, %v1597
        %v1599 = vpop.f32.mrb[0].mxu0
        %v1600 = vadd.f32 0.0, %v1599
        %v1601 = vpop.f32.mrb[0].mxu0
        %v1602 = vadd.f32 0.0, %v1601
        %1603 = vdwg.mxu0
        %v1604 = vadd.f32 %v1251, %v1526
        %v1605 = vadd.f32 %v1252, %v1528
        %v1606 = vadd.f32 %v1253, %v1530
        %v1607 = vadd.f32 %v1254, %v1532
        %v1608 = vadd.f32 %v1255, %v1536
        %v1609 = vadd.f32 %v1256, %v1538
        %v1610 = vadd.f32 %v1257, %v1540
        %v1611 = vadd.f32 %v1258, %v1542
        %v1612 = vadd.f32 %v1259, %v1546
        %v1613 = vadd.f32 %v1260, %v1548
        %v1614 = vadd.f32 %v1261, %v1550
        %v1615 = vadd.f32 %v1262, %v1552
        %v1616 = vadd.f32 %v1263, %v1556
        %v1617 = vadd.f32 %v1264, %v1558
        %v1618 = vadd.f32 %v1265, %v1560
        %v1619 = vadd.f32 %v1266, %v1562
        %v1620 = vadd.f32 %v1267, %v1566
        %v1621 = vadd.f32 %v1268, %v1568
        %v1622 = vadd.f32 %v1269, %v1570
        %v1623 = vadd.f32 %v1270, %v1572
        %v1624 = vadd.f32 %v1271, %v1576
        %v1625 = vadd.f32 %v1272, %v1578
        %v1626 = vadd.f32 %v1273, %v1580
        %v1627 = vadd.f32 %v1274, %v1582
        %v1628 = vadd.f32 %v1275, %v1586
        %v1629 = vadd.f32 %v1276, %v1588
        %v1630 = vadd.f32 %v1277, %v1590
        %v1631 = vadd.f32 %v1278, %v1592
        %v1632 = vadd.f32 %v1279, %v1596
        %v1633 = vadd.f32 %v1280, %v1598
        %v1634 = vadd.f32 %v1281, %v1600
        %v1635 = vadd.f32 %v1282, %v1602
        %1636 = vst [vmem:[#allocation2] sm:$0xff] %v1604
        %1637 = vst [vmem:[#allocation2 + $0x8] sm:$0xff] %v1605
        %1638 = vst [vmem:[#allocation2 + $0x10] sm:$0xff] %v1606
        %1639 = vst [vmem:[#allocation2 + $0x18] sm:$0xff] %v1607
        %1640 = vst [vmem:[#allocation2 + $0x20] sm:$0xff] %v1608
        %1641 = vst [vmem:[#allocation2 + $0x28] sm:$0xff] %v1609
        %1642 = vst [vmem:[#allocation2 + $0x30] sm:$0xff] %v1610
        %1643 = vst [vmem:[#allocation2 + $0x38] sm:$0xff] %v1611
        %1644 = vst [vmem:[#allocation2 + $0x40] sm:$0xff] %v1612
        %1645 = vst [vmem:[#allocation2 + $0x48] sm:$0xff] %v1613
        %1646 = vst [vmem:[#allocation2 + $0x50] sm:$0xff] %v1614
        %1647 = vst [vmem:[#allocation2 + $0x58] sm:$0xff] %v1615
        %1648 = vst [vmem:[#allocation2 + $0x60] sm:$0xff] %v1616
        %1649 = vst [vmem:[#allocation2 + $0x68] sm:$0xff] %v1617
        %1650 = vst [vmem:[#allocation2 + $0x70] sm:$0xff] %v1618
        %1651 = vst [vmem:[#allocation2 + $0x78] sm:$0xff] %v1619
        %1652 = vst [vmem:[#allocation2 + $0x80] sm:$0xff] %v1620
        %1653 = vst [vmem:[#allocation2 + $0x88] sm:$0xff] %v1621
        %1654 = vst [vmem:[#allocation2 + $0x90] sm:$0xff] %v1622
        %1655 = vst [vmem:[#allocation2 + $0x98] sm:$0xff] %v1623
        %1656 = vst [vmem:[#allocation2 + $0xa0] sm:$0xff] %v1624
        %1657 = vst [vmem:[#allocation2 + $0xa8] sm:$0xff] %v1625
        %1658 = vst [vmem:[#allocation2 + $0xb0] sm:$0xff] %v1626
        %1659 = vst [vmem:[#allocation2 + $0xb8] sm:$0xff] %v1627
        %1660 = vst [vmem:[#allocation2 + $0xc0] sm:$0xff] %v1628
        %1661 = vst [vmem:[#allocation2 + $0xc8] sm:$0xff] %v1629
        %1662 = vst [vmem:[#allocation2 + $0xd0] sm:$0xff] %v1630
        %1663 = vst [vmem:[#allocation2 + $0xd8] sm:$0xff] %v1631
        %1664 = vst [vmem:[#allocation2 + $0xe0] sm:$0xff] %v1632
        %1665 = vst [vmem:[#allocation2 + $0xe8] sm:$0xff] %v1633
        %1666 = vst [vmem:[#allocation2 + $0xf0] sm:$0xff] %v1634
        %1667 = vst [vmem:[#allocation2 + $0xf8] sm:$0xff] %v1635
        %p1668 = scmp.eq.s32.totalorder %s25, 1
        // Predicated region
        $region41: #{mlp_forward.1} parent=31 // pred_check
          %p1669 = pneg %p1668
        $region42: #{mlp_forward.1} parent=31 // pred_check_branch
          %1671 = sbr.rel (%p1669) target = $region44
        $region43: #{mlp_forward.1} parent=31 // pred_region
          %v1672 = vld [vmem:[#allocation2] sm:$0xff]
          %v1673 = vld [vmem:[#allocation2 + $0x8] sm:$0xff]
          %v1674 = vld [vmem:[#allocation2 + $0x10] sm:$0xff]
          %v1675 = vld [vmem:[#allocation2 + $0x18] sm:$0xff]
          %v1676 = vld [vmem:[#allocation2 + $0x20] sm:$0xff]
          %v1677 = vld [vmem:[#allocation2 + $0x28] sm:$0xff]
          %v1678 = vld [vmem:[#allocation2 + $0x30] sm:$0xff]
          %v1679 = vld [vmem:[#allocation2 + $0x38] sm:$0xff]
          %v1680 = vld [vmem:[#allocation2 + $0x40] sm:$0xff]
          %v1681 = vld [vmem:[#allocation2 + $0x48] sm:$0xff]
          %v1682 = vld [vmem:[#allocation2 + $0x50] sm:$0xff]
          %v1683 = vld [vmem:[#allocation2 + $0x58] sm:$0xff]
          %v1684 = vld [vmem:[#allocation2 + $0x60] sm:$0xff]
          %v1685 = vld [vmem:[#allocation2 + $0x68] sm:$0xff]
          %v1686 = vld [vmem:[#allocation2 + $0x70] sm:$0xff]
          %v1687 = vld [vmem:[#allocation2 + $0x78] sm:$0xff]
          %v1688 = vld [vmem:[#allocation2 + $0x80] sm:$0xff]
          %v1689 = vld [vmem:[#allocation2 + $0x88] sm:$0xff]
          %v1690 = vld [vmem:[#allocation2 + $0x90] sm:$0xff]
          %v1691 = vld [vmem:[#allocation2 + $0x98] sm:$0xff]
          %v1692 = vld [vmem:[#allocation2 + $0xa0] sm:$0xff]
          %v1693 = vld [vmem:[#allocation2 + $0xa8] sm:$0xff]
          %v1694 = vld [vmem:[#allocation2 + $0xb0] sm:$0xff]
          %v1695 = vld [vmem:[#allocation2 + $0xb8] sm:$0xff]
          %v1696 = vld [vmem:[#allocation2 + $0xc0] sm:$0xff]
          %v1697 = vld [vmem:[#allocation2 + $0xc8] sm:$0xff]
          %v1698 = vld [vmem:[#allocation2 + $0xd0] sm:$0xff]
          %v1699 = vld [vmem:[#allocation2 + $0xd8] sm:$0xff]
          %v1700 = vld [vmem:[#allocation2 + $0xe0] sm:$0xff]
          %v1701 = vld [vmem:[#allocation2 + $0xe8] sm:$0xff]
          %v1702 = vld [vmem:[#allocation2 + $0xf0] sm:$0xff]
          %v1703 = vld [vmem:[#allocation2 + $0xf8] sm:$0xff]
          %1704 = vst [vmem:[%s236] sm:$0xff] %v1672
          %1705 = vst [vmem:[%s236 + $0x8] sm:$0xff] %v1673
          %1706 = vst [vmem:[%s236 + $0x10] sm:$0xff] %v1674
          %1707 = vst [vmem:[%s236 + $0x18] sm:$0xff] %v1675
          %1708 = vst [vmem:[%s236 + $0x20] sm:$0xff] %v1676
          %1709 = vst [vmem:[%s236 + $0x28] sm:$0xff] %v1677
          %1710 = vst [vmem:[%s236 + $0x30] sm:$0xff] %v1678
          %1711 = vst [vmem:[%s236 + $0x38] sm:$0xff] %v1679
          %1712 = vst [vmem:[%s236 + $0x40] sm:$0xff] %v1680
          %1713 = vst [vmem:[%s236 + $0x48] sm:$0xff] %v1681
          %1714 = vst [vmem:[%s236 + $0x50] sm:$0xff] %v1682
          %1715 = vst [vmem:[%s236 + $0x58] sm:$0xff] %v1683
          %1716 = vst [vmem:[%s236 + $0x60] sm:$0xff] %v1684
          %1717 = vst [vmem:[%s236 + $0x68] sm:$0xff] %v1685
          %1718 = vst [vmem:[%s236 + $0x70] sm:$0xff] %v1686
          %1719 = vst [vmem:[%s236 + $0x78] sm:$0xff] %v1687
          %1720 = vst [vmem:[%s236 + $0x80] sm:$0xff] %v1688
          %1721 = vst [vmem:[%s236 + $0x88] sm:$0xff] %v1689
          %1722 = vst [vmem:[%s236 + $0x90] sm:$0xff] %v1690
          %1723 = vst [vmem:[%s236 + $0x98] sm:$0xff] %v1691
          %1724 = vst [vmem:[%s236 + $0xa0] sm:$0xff] %v1692
          %1725 = vst [vmem:[%s236 + $0xa8] sm:$0xff] %v1693
          %1726 = vst [vmem:[%s236 + $0xb0] sm:$0xff] %v1694
          %1727 = vst [vmem:[%s236 + $0xb8] sm:$0xff] %v1695
          %1728 = vst [vmem:[%s236 + $0xc0] sm:$0xff] %v1696
          %1729 = vst [vmem:[%s236 + $0xc8] sm:$0xff] %v1697
          %1730 = vst [vmem:[%s236 + $0xd0] sm:$0xff] %v1698
          %1731 = vst [vmem:[%s236 + $0xd8] sm:$0xff] %v1699
          %1732 = vst [vmem:[%s236 + $0xe0] sm:$0xff] %v1700
          %1733 = vst [vmem:[%s236 + $0xe8] sm:$0xff] %v1701
          %1734 = vst [vmem:[%s236 + $0xf0] sm:$0xff] %v1702
          %1735 = vst [vmem:[%s236 + $0xf8] sm:$0xff] %v1703
        $region44: #{mlp_forward.1} parent=31 // pred_fallthru
          _
        %s1736 = sand.u32 %s118, 1
        %s1737 = scalar_lea.sflag [#allocation5], %s1736
        %s1738 = sand.u32 %s118, 1
        %s1739 = smul.addr %s1738, 256
        %s1740 = scalar_lea.vmem [#allocation6], %s1739
        // Predicated region
        $region45: #{mlp_forward.1} parent=31 // pred_check
          %p1741 = pneg %p128
        $region46: #{mlp_forward.1} parent=31 // pred_check_branch
          %1743 = sbr.rel (%p1741) target = $region48
        $region47: #{mlp_forward.1} parent=31 // pred_region
          %s1744 = smul.u32 16, %s24
          %s1746 = ssub.s32 4096, 4096
          %1747 = vsyncadd %s1737, %s1746
          %s1748 = smul.addr %s1744, 2
          %s1749 = smul.addr %s1748, 128
          %s1750 = scalar_lea.hbm %s3, %s1749
          %s1751 = sshll.u32 %s1740, 4
          %s1752 = int_to_ptr.vmem [resolvable:$true] %s1751
          %1757 = dma.vmem_to_hbm [thread:$0]  %s1752, 4096, %s1750, %s1737, 256, 256, 16
        $region48: #{mlp_forward.1} parent=31 // pred_fallthru
          _
      $region32: #{mlp_forward.1} parent=5 // pred_fallthru
        _
      %p1758 = scmp.le.s32.totalorder 2, %s15
      // Predicated region
      $region49: #{mlp_forward.1} parent=5 // pred_check
        %p1759 = pneg %p1758
      $region50: #{mlp_forward.1} parent=5 // pred_check_branch
        %1761 = sbr.rel (%p1759) target = $region52
      $region51: #{mlp_forward.1} parent=5 // pred_region
        %s1762 = ssub.s32 %s15, 2
        // Predicated region
        $region53: #{mlp_forward.1} parent=51 // pred_check
          %p1763 = pneg %p134
        $region54: #{mlp_forward.1} parent=51 // pred_check_branch
          %1765 = sbr.rel (%p1763) target = $region56
        $region55: #{mlp_forward.1} parent=51 // pred_region
          %s1766 = sand.u32 %s119, 1
          %s1767 = scalar_lea.sflag [#allocation5], %s1766
          %s1768 = sand.u32 %s119, 1
          %s1769 = smul.addr %s1768, 256
          %s1770 = scalar_lea.vmem [#allocation6], %s1769
          %1771 = dma.done %s1767, 4096
        $region56: #{mlp_forward.1} parent=51 // pred_fallthru
          _
      $region52: #{mlp_forward.1} parent=5 // pred_fallthru
        _
    $region6: #{mlp_forward.1} parent=1 // loop_footer
      %s19 = sadd.s32 1, %s15
    $region7: #{mlp_forward.1} parent=1 // loop_footer_branch
      %14 = sbr.rel target = $region3
    $region8: #{mlp_forward.1} parent=1 // loop_exit
      _
    %1772 = vsyncpa [#allocation4], 1
    %s1773 = scalar_lea.sflag [#allocation4], 1
    %1774 = vsyncpa %s1773, 1
    %1775 = vsyncpa [#allocation5], 1
    %s1776 = scalar_lea.sflag [#allocation5], 1
    %1777 = vsyncpa %s1776, 1

</llo_original>
